<compile_context>
chip_gen: v7x
topology: tpu7x:2x2x1
jax: 0.10.0
libtpu: 0.0.40
codegen_flags: <defaults>
</compile_context>

<pallas_src>
import functools

import jax
import jax.numpy as jnp
from jax.experimental import pallas as pl
from jax.experimental.pallas import tpu as pltpu


def _drqn_kernel(x_ref, h0_ref, c0_ref,
                 w1_ref, b1_ref, w2_ref, b2_ref,
                 wih_ref, whh_ref, bl_ref, wo_ref, bo_ref,
                 q_ref, h_out_ref, c_out_ref,
                 lstm_scr, *, hidden_size, seq_len, batch):
    H = hidden_size
    B = batch

    # ---- batched, time-independent work: feature extractor + input projection
    x = x_ref[...]                                                    # (S*B, D)
    f1 = jnp.dot(x, w1_ref[...], preferred_element_type=jnp.float32) + b1_ref[...]
    f1 = jnp.where(f1 > 0, f1, 0.01 * f1)                             # LeakyReLU
    f2 = jnp.dot(f1, w2_ref[...], preferred_element_type=jnp.float32) + b2_ref[...]
    f2 = jnp.where(f2 > 0, f2, 0.01 * f2)
    # x_proj for every timestep in one pass: (S*B, 4H)
    xp = jnp.dot(f2, wih_ref[...], preferred_element_type=jnp.float32) + bl_ref[...]

    # ---- serial LSTM recurrence (only h @ W_hh remains on the critical path)
    h = h0_ref[...]                                                   # (B, H)
    c = c0_ref[...]
    w_hh = whh_ref[...]                                               # (H, 4H)

    for t in range(seq_len):                      # static unroll, S is small
        xp_t = xp[t * B:(t + 1) * B, :]                               # (B, 4H)
        gates = xp_t + jnp.dot(h, w_hh, preferred_element_type=jnp.float32)
        # Full-width transcendentals (EUP), slice the activated results.
        sig = jax.nn.sigmoid(gates)
        th = jnp.tanh(gates)
        i_g = sig[:, 0 * H:1 * H]
        f_g = sig[:, 1 * H:2 * H]
        g_g = th[:, 2 * H:3 * H]
        o_g = sig[:, 3 * H:4 * H]
        c = f_g * c + i_g * g_g
        h = o_g * jnp.tanh(c)
        lstm_scr[t * B:(t + 1) * B, :] = h                            # static offsets

    # ---- output projection on the whole lstm_out slab (one MXU pass).
    # wo_ref / bo_ref are lane-padded to 128 so this store is unmasked.
    lstm_all = lstm_scr[...]                                          # (S*B, H)
    q_ref[...] = (jnp.dot(lstm_all, wo_ref[...],
                          preferred_element_type=jnp.float32) + bo_ref[...])

    # Final LSTM state, written once.
    h_out_ref[0] = h
    c_out_ref[0] = c


def drqn_forward(state, params, hidden_state=None, *, hidden_size):
    """state: [batch, seq, input_dim] float32.  Returns (q, (h, c)) like nn.LSTM."""
    B, S, D = state.shape
    H = hidden_size
    A = params["w_out"].shape[1]
    A_pad = ((A + 127) // 128) * 128             # lane-dense output width

    if hidden_state is None:
        h0 = jnp.zeros((B, H), jnp.float32)
        c0 = jnp.zeros((B, H), jnp.float32)
    else:
        h0 = hidden_state[0].reshape(B, H).astype(jnp.float32)
        c0 = hidden_state[1].reshape(B, H).astype(jnp.float32)

    # Time-major flat layout [S*B, D] so per-step rows are a contiguous slice.
    x_tm = jnp.transpose(state, (1, 0, 2)).reshape(S * B, D)

    # Zero-pad the output projection to 128 lanes: the kernel's largest store
    # becomes an unmasked, lane-dense vst; padded columns are sliced off below.
    w_out_p = jnp.pad(params["w_out"], ((0, 0), (0, A_pad - A)))
    b_out_p = jnp.pad(params["b_out"], ((0, 0), (0, A_pad - A)))

    kernel = functools.partial(_drqn_kernel, hidden_size=H, seq_len=S, batch=B)

    q2d, h_out, c_out = pl.pallas_call(
        kernel,
        out_shape=(
            jax.ShapeDtypeStruct((S * B, A_pad), jnp.float32),
            jax.ShapeDtypeStruct((1, B, H), jnp.float32),    # nn.LSTM layer dim = 1
            jax.ShapeDtypeStruct((1, B, H), jnp.float32),
        ),
        scratch_shapes=[
            pltpu.VMEM((S * B, H), jnp.float32),             # lstm_out slab
        ],
    )(x_tm, h0, c0,
      params["w1"], params["b1"], params["w2"], params["b2"],
      params["w_ih"], params["w_hh"], params["b_lstm"],
      w_out_p, b_out_p)

    q = jnp.transpose(q2d[:, :A].reshape(S, B, A), (1, 0, 2))  # back to [B, S, A1*A2]
    return q, (h_out, c_out)


def init_params(key, input_dim, action_dim_1, action_dim_2, hidden_size):
    """Mirrors _init_weights: weights ~ N(0, 0.1), biases 0.
    Weights stored transposed (in_features, out_features)."""
    H = hidden_size
    A = action_dim_1 * action_dim_2
    ks = jax.random.split(key, 5)
    std = 0.1
    return {
        "w1": std * jax.random.normal(ks[0], (input_dim, H), jnp.float32),
        "b1": jnp.zeros((1, H), jnp.float32),
        "w2": std * jax.random.normal(ks[1], (H, H), jnp.float32),
        "b2": jnp.zeros((1, H), jnp.float32),
        # torch weight_ih / weight_hh are [4H, H]; transposed here. Gate order i,f,g,o.
        "w_ih": std * jax.random.normal(ks[2], (H, 4 * H), jnp.float32),
        "w_hh": std * jax.random.normal(ks[3], (H, 4 * H), jnp.float32),
        "b_lstm": jnp.zeros((1, 4 * H), jnp.float32),       # b_ih + b_hh (both zero)
        "w_out": std * jax.random.normal(ks[4], (H, A), jnp.float32),
        "b_out": jnp.zeros((1, A), jnp.float32),
    }


def drqn_forward_ref(state, params, hidden_state=None, *, hidden_size):
    """Pure-JAX reference (same math as the torch module) for verification."""
    B, S, D = state.shape
    H = hidden_size
    x = state.reshape(-1, D)
    f = jnp.dot(x, params["w1"]) + params["b1"]
    f = jnp.where(f > 0, f, 0.01 * f)
    f = jnp.dot(f, params["w2"]) + params["b2"]
    f = jnp.where(f > 0, f, 0.01 * f)
    feats = f.reshape(B, S, H)

    def step(carry, xt):
        h, c = carry
        gates = xt @ params["w_ih"] + h @ params["w_hh"] + params["b_lstm"]
        i = jax.nn.sigmoid(gates[:, 0 * H:1 * H])
        fg = jax.nn.sigmoid(gates[:, 1 * H:2 * H])
        g = jnp.tanh(gates[:, 2 * H:3 * H])
        o = jax.nn.sigmoid(gates[:, 3 * H:4 * H])
        c_new = fg * c + i * g
        h_new = o * jnp.tanh(c_new)
        return (h_new, c_new), h_new

    if hidden_state is None:
        h0 = jnp.zeros((B, H), jnp.float32)
        c0 = jnp.zeros((B, H), jnp.float32)
    else:
        h0 = hidden_state[0].reshape(B, H)
        c0 = hidden_state[1].reshape(B, H)
    (hT, cT), hs = jax.lax.scan(step, (h0, c0), jnp.transpose(feats, (1, 0, 2)))
    lstm_out = jnp.transpose(hs, (1, 0, 2))
    q = jnp.dot(lstm_out, params["w_out"]) + params["b_out"]
    return q, (hT[None], cT[None])


if __name__ == "__main__":
    # Small shapes consistent with the module's forward.
    batch, seq_len = 2, 8
    input_dim, hidden_size = 8, 32
    action_dim_1, action_dim_2 = 4, 3
    A = action_dim_1 * action_dim_2

    key = jax.random.PRNGKey(0)
    pkey, xkey, hkey, ckey = jax.random.split(key, 4)
    params = init_params(pkey, input_dim, action_dim_1, action_dim_2, hidden_size)
    state = jax.random.normal(xkey, (batch, seq_len, input_dim), jnp.float32)

    # --- default path: hidden_state=None (zero init), matches the torch module
    q, (h, c) = drqn_forward(state, params, hidden_size=hidden_size)
    q = jax.block_until_ready(q)
    h = jax.block_until_ready(h)
    c = jax.block_until_ready(c)

    q_ref, (h_ref, c_ref) = drqn_forward_ref(state, params, hidden_size=hidden_size)
    assert q.shape == (batch, seq_len, A)
    assert h.shape == (1, batch, hidden_size) and c.shape == (1, batch, hidden_size)
    assert jnp.allclose(q, q_ref, atol=1e-4, rtol=1e-4)
    assert jnp.allclose(h, h_ref, atol=1e-4, rtol=1e-4)
    assert jnp.allclose(c, c_ref, atol=1e-4, rtol=1e-4)

    # --- caller-provided hidden state path (nn.LSTM(features, hidden_state))
    h0 = 0.1 * jax.random.normal(hkey, (1, batch, hidden_size), jnp.float32)
    c0 = 0.1 * jax.random.normal(ckey, (1, batch, hidden_size), jnp.float32)
    q2, (h2, c2) = drqn_forward(state, params, (h0, c0), hidden_size=hidden_size)
    q2 = jax.block_until_ready(q2)
    q2_ref, (h2_ref, c2_ref) = drqn_forward_ref(state, params, (h0, c0),
                                                hidden_size=hidden_size)
    assert jnp.allclose(q2, q2_ref, atol=1e-4, rtol=1e-4)
    assert jnp.allclose(h2, h2_ref, atol=1e-4, rtol=1e-4)
    assert jnp.allclose(c2, c2_ref, atol=1e-4, rtol=1e-4)

    print("KERNEL_OK")
</pallas_src>

<mosaic_0001>
module attributes {stable_mosaic.version = 11 : i64} {
  func.func @_drqn_kernel(%arg0: memref<16x8xf32, #tpu.memory_space<vmem>>, %arg1: memref<2x32xf32, #tpu.memory_space<vmem>>, %arg2: memref<2x32xf32, #tpu.memory_space<vmem>>, %arg3: memref<8x32xf32, #tpu.memory_space<vmem>>, %arg4: memref<1x32xf32, #tpu.memory_space<vmem>>, %arg5: memref<32x32xf32, #tpu.memory_space<vmem>>, %arg6: memref<1x32xf32, #tpu.memory_space<vmem>>, %arg7: memref<32x128xf32, #tpu.memory_space<vmem>>, %arg8: memref<32x128xf32, #tpu.memory_space<vmem>>, %arg9: memref<1x128xf32, #tpu.memory_space<vmem>>, %arg10: memref<32x128xf32, #tpu.memory_space<vmem>>, %arg11: memref<1x128xf32, #tpu.memory_space<vmem>>, %arg12: memref<16x128xf32, #tpu.memory_space<vmem>>, %arg13: memref<1x2x32xf32, #tpu.memory_space<vmem>>, %arg14: memref<1x2x32xf32, #tpu.memory_space<vmem>>, %arg15: memref<16x32xf32, #tpu.memory_space<vmem>>) attributes {dimension_semantics = [], scalar_prefetch = 0 : i64, scratch_operands = 1 : i64, tpu.core_type = #tpu.core_type<tc>} {
    %c0 = arith.constant 0 : index
    %c0_0 = arith.constant 0 : index
    %0 = vector.load %arg0[%c0, %c0_0] : memref<16x8xf32, #tpu.memory_space<vmem>>, vector<16x8xf32>
    %c0_1 = arith.constant 0 : index
    %c0_2 = arith.constant 0 : index
    %1 = vector.load %arg3[%c0_1, %c0_2] : memref<8x32xf32, #tpu.memory_space<vmem>>, vector<8x32xf32>
    %cst = arith.constant dense<0.000000e+00> : vector<16x32xf32>
    %2 = tpu.matmul %0, %1, %cst {dimension_numbers = #tpu.dot_dimension_numbers<[1], [0], [0], [1], [0, 0, 1, 1], [], []>} : vector<16x8xf32>, vector<8x32xf32>, vector<16x32xf32> -> vector<16x32xf32>
    %c0_3 = arith.constant 0 : index
    %c0_4 = arith.constant 0 : index
    %3 = vector.load %arg4[%c0_3, %c0_4] : memref<1x32xf32, #tpu.memory_space<vmem>>, vector<1x32xf32>
    %4 = vector.broadcast %3 : vector<1x32xf32> to vector<16x32xf32>
    %5 = arith.addf %2, %4 : vector<16x32xf32>
    %cst_5 = arith.constant 0.000000e+00 : f32
    %6 = vector.broadcast %cst_5 : f32 to vector<16x32xf32>
    %7 = arith.cmpf ogt, %5, %6 : vector<16x32xf32>
    %cst_6 = arith.constant 0.00999999977 : f32
    %8 = vector.broadcast %cst_6 : f32 to vector<16x32xf32>
    %9 = arith.mulf %8, %5 : vector<16x32xf32>
    %10 = arith.select %7, %5, %9 : vector<16x32xi1>, vector<16x32xf32>
    %c0_7 = arith.constant 0 : index
    %c0_8 = arith.constant 0 : index
    %11 = vector.load %arg5[%c0_7, %c0_8] : memref<32x32xf32, #tpu.memory_space<vmem>>, vector<32x32xf32>
    %cst_9 = arith.constant dense<0.000000e+00> : vector<16x32xf32>
    %12 = tpu.matmul %10, %11, %cst_9 {dimension_numbers = #tpu.dot_dimension_numbers<[1], [0], [0], [1], [0, 0, 1, 1], [], []>} : vector<16x32xf32>, vector<32x32xf32>, vector<16x32xf32> -> vector<16x32xf32>
    %c0_10 = arith.constant 0 : index
    %c0_11 = arith.constant 0 : index
    %13 = vector.load %arg6[%c0_10, %c0_11] : memref<1x32xf32, #tpu.memory_space<vmem>>, vector<1x32xf32>
    %14 = vector.broadcast %13 : vector<1x32xf32> to vector<16x32xf32>
    %15 = arith.addf %12, %14 : vector<16x32xf32>
    %cst_12 = arith.constant 0.000000e+00 : f32
    %16 = vector.broadcast %cst_12 : f32 to vector<16x32xf32>
    %17 = arith.cmpf ogt, %15, %16 : vector<16x32xf32>
    %cst_13 = arith.constant 0.00999999977 : f32
    %18 = vector.broadcast %cst_13 : f32 to vector<16x32xf32>
    %19 = arith.mulf %18, %15 : vector<16x32xf32>
    %20 = arith.select %17, %15, %19 : vector<16x32xi1>, vector<16x32xf32>
    %c0_14 = arith.constant 0 : index
    %c0_15 = arith.constant 0 : index
    %21 = vector.load %arg7[%c0_14, %c0_15] : memref<32x128xf32, #tpu.memory_space<vmem>>, vector<32x128xf32>
    %cst_16 = arith.constant dense<0.000000e+00> : vector<16x128xf32>
    %22 = tpu.matmul %20, %21, %cst_16 {dimension_numbers = #tpu.dot_dimension_numbers<[1], [0], [0], [1], [0, 0, 1, 1], [], []>} : vector<16x32xf32>, vector<32x128xf32>, vector<16x128xf32> -> vector<16x128xf32>
    %c0_17 = arith.constant 0 : index
    %c0_18 = arith.constant 0 : index
    %23 = vector.load %arg9[%c0_17, %c0_18] : memref<1x128xf32, #tpu.memory_space<vmem>>, vector<1x128xf32>
    %24 = vector.broadcast %23 : vector<1x128xf32> to vector<16x128xf32>
    %25 = arith.addf %22, %24 : vector<16x128xf32>
    %c0_19 = arith.constant 0 : index
    %c0_20 = arith.constant 0 : index
    %26 = vector.load %arg1[%c0_19, %c0_20] : memref<2x32xf32, #tpu.memory_space<vmem>>, vector<2x32xf32>
    %c0_21 = arith.constant 0 : index
    %c0_22 = arith.constant 0 : index
    %27 = vector.load %arg2[%c0_21, %c0_22] : memref<2x32xf32, #tpu.memory_space<vmem>>, vector<2x32xf32>
    %c0_23 = arith.constant 0 : index
    %c0_24 = arith.constant 0 : index
    %28 = vector.load %arg8[%c0_23, %c0_24] : memref<32x128xf32, #tpu.memory_space<vmem>>, vector<32x128xf32>
    %29 = vector.extract_strided_slice %25 {offsets = [0, 0], sizes = [2, 128], strides = [1, 1]} : vector<16x128xf32> to vector<2x128xf32>
    %cst_25 = arith.constant dense<0.000000e+00> : vector<2x128xf32>
    %30 = tpu.matmul %26, %28, %cst_25 {dimension_numbers = #tpu.dot_dimension_numbers<[1], [0], [0], [1], [0, 0, 1, 1], [], []>} : vector<2x32xf32>, vector<32x128xf32>, vector<2x128xf32> -> vector<2x128xf32>
    %31 = arith.addf %29, %30 : vector<2x128xf32>
    %32 = arith.negf %31 : vector<2x128xf32>
    %33 = math.exp %32 : vector<2x128xf32>
    %cst_26 = arith.constant 1.000000e+00 : f32
    %34 = vector.broadcast %cst_26 : f32 to vector<2x128xf32>
    %35 = arith.addf %34, %33 : vector<2x128xf32>
    %36 = arith.divf %34, %35 : vector<2x128xf32>
    %37 = math.tanh %31 : vector<2x128xf32>
    %38 = vector.extract_strided_slice %36 {offsets = [0, 0], sizes = [2, 32], strides = [1, 1]} : vector<2x128xf32> to vector<2x32xf32>
    %39 = vector.extract_strided_slice %36 {offsets = [0, 32], sizes = [2, 32], strides = [1, 1]} : vector<2x128xf32> to vector<2x32xf32>
    %40 = vector.extract_strided_slice %37 {offsets = [0, 64], sizes = [2, 32], strides = [1, 1]} : vector<2x128xf32> to vector<2x32xf32>
    %41 = vector.extract_strided_slice %36 {offsets = [0, 96], sizes = [2, 32], strides = [1, 1]} : vector<2x128xf32> to vector<2x32xf32>
    %42 = arith.mulf %39, %27 : vector<2x32xf32>
    %43 = arith.mulf %38, %40 : vector<2x32xf32>
    %44 = arith.addf %42, %43 : vector<2x32xf32>
    %45 = math.tanh %44 : vector<2x32xf32>
    %46 = arith.mulf %41, %45 : vector<2x32xf32>
    %c0_27 = arith.constant 0 : index
    %c0_28 = arith.constant 0 : index
    %47 = vector.load %arg15[%c0_27, %c0_28] : memref<16x32xf32, #tpu.memory_space<vmem>>, vector<2x32xf32>
    tpu.vector_store %arg15[%c0_27, %c0_28], %46 {strides = array<i32>} : memref<16x32xf32, #tpu.memory_space<vmem>>, vector<2x32xf32>,
    %48 = vector.extract_strided_slice %25 {offsets = [2, 0], sizes = [2, 128], strides = [1, 1]} : vector<16x128xf32> to vector<2x128xf32>
    %cst_29 = arith.constant dense<0.000000e+00> : vector<2x128xf32>
    %49 = tpu.matmul %46, %28, %cst_29 {dimension_numbers = #tpu.dot_dimension_numbers<[1], [0], [0], [1], [0, 0, 1, 1], [], []>} : vector<2x32xf32>, vector<32x128xf32>, vector<2x128xf32> -> vector<2x128xf32>
    %50 = arith.addf %48, %49 : vector<2x128xf32>
    %51 = arith.negf %50 : vector<2x128xf32>
    %52 = math.exp %51 : vector<2x128xf32>
    %cst_30 = arith.constant 1.000000e+00 : f32
    %53 = vector.broadcast %cst_30 : f32 to vector<2x128xf32>
    %54 = arith.addf %53, %52 : vector<2x128xf32>
    %55 = arith.divf %53, %54 : vector<2x128xf32>
    %56 = math.tanh %50 : vector<2x128xf32>
    %57 = vector.extract_strided_slice %55 {offsets = [0, 0], sizes = [2, 32], strides = [1, 1]} : vector<2x128xf32> to vector<2x32xf32>
    %58 = vector.extract_strided_slice %55 {offsets = [0, 32], sizes = [2, 32], strides = [1, 1]} : vector<2x128xf32> to vector<2x32xf32>
    %59 = vector.extract_strided_slice %56 {offsets = [0, 64], sizes = [2, 32], strides = [1, 1]} : vector<2x128xf32> to vector<2x32xf32>
    %60 = vector.extract_strided_slice %55 {offsets = [0, 96], sizes = [2, 32], strides = [1, 1]} : vector<2x128xf32> to vector<2x32xf32>
    %61 = arith.mulf %58, %44 : vector<2x32xf32>
    %62 = arith.mulf %57, %59 : vector<2x32xf32>
    %63 = arith.addf %61, %62 : vector<2x32xf32>
    %64 = math.tanh %63 : vector<2x32xf32>
    %65 = arith.mulf %60, %64 : vector<2x32xf32>
    %c2 = arith.constant 2 : index
    %c0_31 = arith.constant 0 : index
    %66 = vector.load %arg15[%c2, %c0_31] : memref<16x32xf32, #tpu.memory_space<vmem>>, vector<2x32xf32>
    tpu.vector_store %arg15[%c2, %c0_31], %65 {strides = array<i32>} : memref<16x32xf32, #tpu.memory_space<vmem>>, vector<2x32xf32>,
    %67 = vector.extract_strided_slice %25 {offsets = [4, 0], sizes = [2, 128], strides = [1, 1]} : vector<16x128xf32> to vector<2x128xf32>
    %cst_32 = arith.constant dense<0.000000e+00> : vector<2x128xf32>
    %68 = tpu.matmul %65, %28, %cst_32 {dimension_numbers = #tpu.dot_dimension_numbers<[1], [0], [0], [1], [0, 0, 1, 1], [], []>} : vector<2x32xf32>, vector<32x128xf32>, vector<2x128xf32> -> vector<2x128xf32>
    %69 = arith.addf %67, %68 : vector<2x128xf32>
    %70 = arith.negf %69 : vector<2x128xf32>
    %71 = math.exp %70 : vector<2x128xf32>
    %cst_33 = arith.constant 1.000000e+00 : f32
    %72 = vector.broadcast %cst_33 : f32 to vector<2x128xf32>
    %73 = arith.addf %72, %71 : vector<2x128xf32>
    %74 = arith.divf %72, %73 : vector<2x128xf32>
    %75 = math.tanh %69 : vector<2x128xf32>
    %76 = vector.extract_strided_slice %74 {offsets = [0, 0], sizes = [2, 32], strides = [1, 1]} : vector<2x128xf32> to vector<2x32xf32>
    %77 = vector.extract_strided_slice %74 {offsets = [0, 32], sizes = [2, 32], strides = [1, 1]} : vector<2x128xf32> to vector<2x32xf32>
    %78 = vector.extract_strided_slice %75 {offsets = [0, 64], sizes = [2, 32], strides = [1, 1]} : vector<2x128xf32> to vector<2x32xf32>
    %79 = vector.extract_strided_slice %74 {offsets = [0, 96], sizes = [2, 32], strides = [1, 1]} : vector<2x128xf32> to vector<2x32xf32>
    %80 = arith.mulf %77, %63 : vector<2x32xf32>
    %81 = arith.mulf %76, %78 : vector<2x32xf32>
    %82 = arith.addf %80, %81 : vector<2x32xf32>
    %83 = math.tanh %82 : vector<2x32xf32>
    %84 = arith.mulf %79, %83 : vector<2x32xf32>
    %c4 = arith.constant 4 : index
    %c0_34 = arith.constant 0 : index
    %85 = vector.load %arg15[%c4, %c0_34] : memref<16x32xf32, #tpu.memory_space<vmem>>, vector<2x32xf32>
    tpu.vector_store %arg15[%c4, %c0_34], %84 {strides = array<i32>} : memref<16x32xf32, #tpu.memory_space<vmem>>, vector<2x32xf32>,
    %86 = vector.extract_strided_slice %25 {offsets = [6, 0], sizes = [2, 128], strides = [1, 1]} : vector<16x128xf32> to vector<2x128xf32>
    %cst_35 = arith.constant dense<0.000000e+00> : vector<2x128xf32>
    %87 = tpu.matmul %84, %28, %cst_35 {dimension_numbers = #tpu.dot_dimension_numbers<[1], [0], [0], [1], [0, 0, 1, 1], [], []>} : vector<2x32xf32>, vector<32x128xf32>, vector<2x128xf32> -> vector<2x128xf32>
    %88 = arith.addf %86, %87 : vector<2x128xf32>
    %89 = arith.negf %88 : vector<2x128xf32>
    %90 = math.exp %89 : vector<2x128xf32>
    %cst_36 = arith.constant 1.000000e+00 : f32
    %91 = vector.broadcast %cst_36 : f32 to vector<2x128xf32>
    %92 = arith.addf %91, %90 : vector<2x128xf32>
    %93 = arith.divf %91, %92 : vector<2x128xf32>
    %94 = math.tanh %88 : vector<2x128xf32>
    %95 = vector.extract_strided_slice %93 {offsets = [0, 0], sizes = [2, 32], strides = [1, 1]} : vector<2x128xf32> to vector<2x32xf32>
    %96 = vector.extract_strided_slice %93 {offsets = [0, 32], sizes = [2, 32], strides = [1, 1]} : vector<2x128xf32> to vector<2x32xf32>
    %97 = vector.extract_strided_slice %94 {offsets = [0, 64], sizes = [2, 32], strides = [1, 1]} : vector<2x128xf32> to vector<2x32xf32>
    %98 = vector.extract_strided_slice %93 {offsets = [0, 96], sizes = [2, 32], strides = [1, 1]} : vector<2x128xf32> to vector<2x32xf32>
    %99 = arith.mulf %96, %82 : vector<2x32xf32>
    %100 = arith.mulf %95, %97 : vector<2x32xf32>
    %101 = arith.addf %99, %100 : vector<2x32xf32>
    %102 = math.tanh %101 : vector<2x32xf32>
    %103 = arith.mulf %98, %102 : vector<2x32xf32>
    %c6 = arith.constant 6 : index
    %c0_37 = arith.constant 0 : index
    %104 = vector.load %arg15[%c6, %c0_37] : memref<16x32xf32, #tpu.memory_space<vmem>>, vector<2x32xf32>
    tpu.vector_store %arg15[%c6, %c0_37], %103 {strides = array<i32>} : memref<16x32xf32, #tpu.memory_space<vmem>>, vector<2x32xf32>,
    %105 = vector.extract_strided_slice %25 {offsets = [8, 0], sizes = [2, 128], strides = [1, 1]} : vector<16x128xf32> to vector<2x128xf32>
    %cst_38 = arith.constant dense<0.000000e+00> : vector<2x128xf32>
    %106 = tpu.matmul %103, %28, %cst_38 {dimension_numbers = #tpu.dot_dimension_numbers<[1], [0], [0], [1], [0, 0, 1, 1], [], []>} : vector<2x32xf32>, vector<32x128xf32>, vector<2x128xf32> -> vector<2x128xf32>
    %107 = arith.addf %105, %106 : vector<2x128xf32>
    %108 = arith.negf %107 : vector<2x128xf32>
    %109 = math.exp %108 : vector<2x128xf32>
    %cst_39 = arith.constant 1.000000e+00 : f32
    %110 = vector.broadcast %cst_39 : f32 to vector<2x128xf32>
    %111 = arith.addf %110, %109 : vector<2x128xf32>
    %112 = arith.divf %110, %111 : vector<2x128xf32>
    %113 = math.tanh %107 : vector<2x128xf32>
    %114 = vector.extract_strided_slice %112 {offsets = [0, 0], sizes = [2, 32], strides = [1, 1]} : vector<2x128xf32> to vector<2x32xf32>
    %115 = vector.extract_strided_slice %112 {offsets = [0, 32], sizes = [2, 32], strides = [1, 1]} : vector<2x128xf32> to vector<2x32xf32>
    %116 = vector.extract_strided_slice %113 {offsets = [0, 64], sizes = [2, 32], strides = [1, 1]} : vector<2x128xf32> to vector<2x32xf32>
    %117 = vector.extract_strided_slice %112 {offsets = [0, 96], sizes = [2, 32], strides = [1, 1]} : vector<2x128xf32> to vector<2x32xf32>
    %118 = arith.mulf %115, %101 : vector<2x32xf32>
    %119 = arith.mulf %114, %116 : vector<2x32xf32>
    %120 = arith.addf %118, %119 : vector<2x32xf32>
    %121 = math.tanh %120 : vector<2x32xf32>
    %122 = arith.mulf %117, %121 : vector<2x32xf32>
    %c8 = arith.constant 8 : index
    %c0_40 = arith.constant 0 : index
    %123 = vector.load %arg15[%c8, %c0_40] : memref<16x32xf32, #tpu.memory_space<vmem>>, vector<2x32xf32>
    tpu.vector_store %arg15[%c8, %c0_40], %122 {strides = array<i32>} : memref<16x32xf32, #tpu.memory_space<vmem>>, vector<2x32xf32>,
    %124 = vector.extract_strided_slice %25 {offsets = [10, 0], sizes = [2, 128], strides = [1, 1]} : vector<16x128xf32> to vector<2x128xf32>
    %cst_41 = arith.constant dense<0.000000e+00> : vector<2x128xf32>
    %125 = tpu.matmul %122, %28, %cst_41 {dimension_numbers = #tpu.dot_dimension_numbers<[1], [0], [0], [1], [0, 0, 1, 1], [], []>} : vector<2x32xf32>, vector<32x128xf32>, vector<2x128xf32> -> vector<2x128xf32>
    %126 = arith.addf %124, %125 : vector<2x128xf32>
    %127 = arith.negf %126 : vector<2x128xf32>
    %128 = math.exp %127 : vector<2x128xf32>
    %cst_42 = arith.constant 1.000000e+00 : f32
    %129 = vector.broadcast %cst_42 : f32 to vector<2x128xf32>
    %130 = arith.addf %129, %128 : vector<2x128xf32>
    %131 = arith.divf %129, %130 : vector<2x128xf32>
    %132 = math.tanh %126 : vector<2x128xf32>
    %133 = vector.extract_strided_slice %131 {offsets = [0, 0], sizes = [2, 32], strides = [1, 1]} : vector<2x128xf32> to vector<2x32xf32>
    %134 = vector.extract_strided_slice %131 {offsets = [0, 32], sizes = [2, 32], strides = [1, 1]} : vector<2x128xf32> to vector<2x32xf32>
    %135 = vector.extract_strided_slice %132 {offsets = [0, 64], sizes = [2, 32], strides = [1, 1]} : vector<2x128xf32> to vector<2x32xf32>
    %136 = vector.extract_strided_slice %131 {offsets = [0, 96], sizes = [2, 32], strides = [1, 1]} : vector<2x128xf32> to vector<2x32xf32>
    %137 = arith.mulf %134, %120 : vector<2x32xf32>
    %138 = arith.mulf %133, %135 : vector<2x32xf32>
    %139 = arith.addf %137, %138 : vector<2x32xf32>
    %140 = math.tanh %139 : vector<2x32xf32>
    %141 = arith.mulf %136, %140 : vector<2x32xf32>
    %c10 = arith.constant 10 : index
    %c0_43 = arith.constant 0 : index
    %142 = vector.load %arg15[%c10, %c0_43] : memref<16x32xf32, #tpu.memory_space<vmem>>, vector<2x32xf32>
    tpu.vector_store %arg15[%c10, %c0_43], %141 {strides = array<i32>} : memref<16x32xf32, #tpu.memory_space<vmem>>, vector<2x32xf32>,
    %143 = vector.extract_strided_slice %25 {offsets = [12, 0], sizes = [2, 128], strides = [1, 1]} : vector<16x128xf32> to vector<2x128xf32>
    %cst_44 = arith.constant dense<0.000000e+00> : vector<2x128xf32>
    %144 = tpu.matmul %141, %28, %cst_44 {dimension_numbers = #tpu.dot_dimension_numbers<[1], [0], [0], [1], [0, 0, 1, 1], [], []>} : vector<2x32xf32>, vector<32x128xf32>, vector<2x128xf32> -> vector<2x128xf32>
    %145 = arith.addf %143, %144 : vector<2x128xf32>
    %146 = arith.negf %145 : vector<2x128xf32>
    %147 = math.exp %146 : vector<2x128xf32>
    %cst_45 = arith.constant 1.000000e+00 : f32
    %148 = vector.broadcast %cst_45 : f32 to vector<2x128xf32>
    %149 = arith.addf %148, %147 : vector<2x128xf32>
    %150 = arith.divf %148, %149 : vector<2x128xf32>
    %151 = math.tanh %145 : vector<2x128xf32>
    %152 = vector.extract_strided_slice %150 {offsets = [0, 0], sizes = [2, 32], strides = [1, 1]} : vector<2x128xf32> to vector<2x32xf32>
    %153 = vector.extract_strided_slice %150 {offsets = [0, 32], sizes = [2, 32], strides = [1, 1]} : vector<2x128xf32> to vector<2x32xf32>
    %154 = vector.extract_strided_slice %151 {offsets = [0, 64], sizes = [2, 32], strides = [1, 1]} : vector<2x128xf32> to vector<2x32xf32>
    %155 = vector.extract_strided_slice %150 {offsets = [0, 96], sizes = [2, 32], strides = [1, 1]} : vector<2x128xf32> to vector<2x32xf32>
    %156 = arith.mulf %153, %139 : vector<2x32xf32>
    %157 = arith.mulf %152, %154 : vector<2x32xf32>
    %158 = arith.addf %156, %157 : vector<2x32xf32>
    %159 = math.tanh %158 : vector<2x32xf32>
    %160 = arith.mulf %155, %159 : vector<2x32xf32>
    %c12 = arith.constant 12 : index
    %c0_46 = arith.constant 0 : index
    %161 = vector.load %arg15[%c12, %c0_46] : memref<16x32xf32, #tpu.memory_space<vmem>>, vector<2x32xf32>
    tpu.vector_store %arg15[%c12, %c0_46], %160 {strides = array<i32>} : memref<16x32xf32, #tpu.memory_space<vmem>>, vector<2x32xf32>,
    %162 = vector.extract_strided_slice %25 {offsets = [14, 0], sizes = [2, 128], strides = [1, 1]} : vector<16x128xf32> to vector<2x128xf32>
    %cst_47 = arith.constant dense<0.000000e+00> : vector<2x128xf32>
    %163 = tpu.matmul %160, %28, %cst_47 {dimension_numbers = #tpu.dot_dimension_numbers<[1], [0], [0], [1], [0, 0, 1, 1], [], []>} : vector<2x32xf32>, vector<32x128xf32>, vector<2x128xf32> -> vector<2x128xf32>
    %164 = arith.addf %162, %163 : vector<2x128xf32>
    %165 = arith.negf %164 : vector<2x128xf32>
    %166 = math.exp %165 : vector<2x128xf32>
    %cst_48 = arith.constant 1.000000e+00 : f32
    %167 = vector.broadcast %cst_48 : f32 to vector<2x128xf32>
    %168 = arith.addf %167, %166 : vector<2x128xf32>
    %169 = arith.divf %167, %168 : vector<2x128xf32>
    %170 = math.tanh %164 : vector<2x128xf32>
    %171 = vector.extract_strided_slice %169 {offsets = [0, 0], sizes = [2, 32], strides = [1, 1]} : vector<2x128xf32> to vector<2x32xf32>
    %172 = vector.extract_strided_slice %169 {offsets = [0, 32], sizes = [2, 32], strides = [1, 1]} : vector<2x128xf32> to vector<2x32xf32>
    %173 = vector.extract_strided_slice %170 {offsets = [0, 64], sizes = [2, 32], strides = [1, 1]} : vector<2x128xf32> to vector<2x32xf32>
    %174 = vector.extract_strided_slice %169 {offsets = [0, 96], sizes = [2, 32], strides = [1, 1]} : vector<2x128xf32> to vector<2x32xf32>
    %175 = arith.mulf %172, %158 : vector<2x32xf32>
    %176 = arith.mulf %171, %173 : vector<2x32xf32>
    %177 = arith.addf %175, %176 : vector<2x32xf32>
    %178 = math.tanh %177 : vector<2x32xf32>
    %179 = arith.mulf %174, %178 : vector<2x32xf32>
    %c14 = arith.constant 14 : index
    %c0_49 = arith.constant 0 : index
    %180 = vector.load %arg15[%c14, %c0_49] : memref<16x32xf32, #tpu.memory_space<vmem>>, vector<2x32xf32>
    tpu.vector_store %arg15[%c14, %c0_49], %179 {strides = array<i32>} : memref<16x32xf32, #tpu.memory_space<vmem>>, vector<2x32xf32>,
    %c0_50 = arith.constant 0 : index
    %c0_51 = arith.constant 0 : index
    %181 = vector.load %arg15[%c0_50, %c0_51] : memref<16x32xf32, #tpu.memory_space<vmem>>, vector<16x32xf32>
    %c0_52 = arith.constant 0 : index
    %c0_53 = arith.constant 0 : index
    %182 = vector.load %arg10[%c0_52, %c0_53] : memref<32x128xf32, #tpu.memory_space<vmem>>, vector<32x128xf32>
    %cst_54 = arith.constant dense<0.000000e+00> : vector<16x128xf32>
    %183 = tpu.matmul %181, %182, %cst_54 {dimension_numbers = #tpu.dot_dimension_numbers<[1], [0], [0], [1], [0, 0, 1, 1], [], []>} : vector<16x32xf32>, vector<32x128xf32>, vector<16x128xf32> -> vector<16x128xf32>
    %c0_55 = arith.constant 0 : index
    %c0_56 = arith.constant 0 : index
    %184 = vector.load %arg11[%c0_55, %c0_56] : memref<1x128xf32, #tpu.memory_space<vmem>>, vector<1x128xf32>
    %185 = vector.broadcast %184 : vector<1x128xf32> to vector<16x128xf32>
    %186 = arith.addf %183, %185 : vector<16x128xf32>
    %c0_57 = arith.constant 0 : index
    %c0_58 = arith.constant 0 : index
    %187 = vector.load %arg12[%c0_57, %c0_58] : memref<16x128xf32, #tpu.memory_space<vmem>>, vector<16x128xf32>
    tpu.vector_store %arg12[%c0_57, %c0_58], %186 {strides = array<i32>} : memref<16x128xf32, #tpu.memory_space<vmem>>, vector<16x128xf32>,
    %c0_59 = arith.constant 0 : index
    %c0_60 = arith.constant 0 : index
    %c0_61 = arith.constant 0 : index
    %188 = vector.load %arg13[%c0_59, %c0_60, %c0_61] : memref<1x2x32xf32, #tpu.memory_space<vmem>>, vector<1x2x32xf32>
    %189 = vector.shape_cast %188 : vector<1x2x32xf32> to vector<2x32xf32>
    %190 = vector.shape_cast %179 : vector<2x32xf32> to vector<1x2x32xf32>
    tpu.vector_store %arg13[%c0_59, %c0_60, %c0_61], %190 {strides = array<i32>} : memref<1x2x32xf32, #tpu.memory_space<vmem>>, vector<1x2x32xf32>,
    %c0_62 = arith.constant 0 : index
    %c0_63 = arith.constant 0 : index
    %c0_64 = arith.constant 0 : index
    %191 = vector.load %arg14[%c0_62, %c0_63, %c0_64] : memref<1x2x32xf32, #tpu.memory_space<vmem>>, vector<1x2x32xf32>
    %192 = vector.shape_cast %191 : vector<1x2x32xf32> to vector<2x32xf32>
    %193 = vector.shape_cast %177 : vector<2x32xf32> to vector<1x2x32xf32>
    tpu.vector_store %arg14[%c0_62, %c0_63, %c0_64], %193 {strides = array<i32>} : memref<1x2x32xf32, #tpu.memory_space<vmem>>, vector<1x2x32xf32>,
    return
  }
}

</mosaic_0001>

<llo_original>
// kernel: tpu_custom_call.1
$region0: #{tpu_custom_call.1}
  #allocation0 [shape = 'u32[]', space=smem, size = 0x4, offset = 0x4, fixed_abs, tag = 'smem constant byte address 0x4 - core index']
  #allocation1 [shape = 'u32[144,128]{1,0:T(1,128)}', space=vmem, size = 0x12000, scoped, tag = 'internal scratch']
  #allocation2 [shape = 'f32[16,32]{1,0:T(8,128)}', space=vmem, size = 0x2000, scoped, tag = 'scratch operand']
  %s0 = inlined_call_operand.vmem [shape: f32[16,8], index: 0, kind: input, shape index: {}]
  %s1 = inlined_call_operand.vmem [shape: f32[2,32], index: 1, kind: input, shape index: {}]
  %s2 = inlined_call_operand.hbm [shape: f32[2,32], index: 2, kind: input, shape index: {}]
  %s3 = inlined_call_operand.vmem [shape: f32[8,32], index: 3, kind: input, shape index: {}]
  %s4 = inlined_call_operand.hbm [shape: f32[1,32], index: 4, kind: input, shape index: {}]
  %s5 = inlined_call_operand.vmem [shape: f32[32,32], index: 5, kind: input, shape index: {}]
  %s6 = inlined_call_operand.vmem [shape: f32[1,32], index: 6, kind: input, shape index: {}]
  %s7 = inlined_call_operand.hbm [shape: f32[32,128], index: 7, kind: input, shape index: {}]
  %s8 = inlined_call_operand.hbm [shape: f32[32,128], index: 8, kind: input, shape index: {}]
  %s9 = inlined_call_operand.vmem [shape: f32[1,128], index: 9, kind: input, shape index: {}]
  %s10 = inlined_call_operand.hbm [shape: f32[32,128], index: 10, kind: input, shape index: {}]
  %s11 = inlined_call_operand.vmem [shape: f32[1,128], index: 11, kind: input, shape index: {}]
  %s12 = inlined_call_operand.hbm [shape: f32[16,128], index: 12, kind: output, shape index: {0}]
  %s13 = inlined_call_operand.hbm [shape: f32[1,2,32], index: 13, kind: output, shape index: {1}]
  %s14 = inlined_call_operand.hbm [shape: f32[1,2,32], index: 14, kind: output, shape index: {2}]
  %15 = xla_tuple %s12, %s13, %s14
  %s16 = sld [smem:[#allocation0]]
  $region94: #{tpu_custom_call.1} parent=0
    _
  %s18 = ssub.s32 1, %s16
  %s19 = scalar_select 0, %s18, %s16
  $region1: #{tpu_custom_call.1} parent=0
    #allocation3 [shape = 'u8[1024]{0}', space=vmem, size = 0x400, scoped, tag = 'input window, operand 2, single buffered']
    #allocation4 [shape = 's32[1]{0}', space=sflag, size = 0x4, scoped, tag = 'scoped memory for tpu_custom_call.1']
    #allocation5 [shape = 's32[1]{0}', space=sflag, size = 0x4, scoped, tag = 'scoped memory for tpu_custom_call.1']
    #allocation6 [shape = 'u8[512]{0}', space=vmem, size = 0x400, scoped, tag = 'input window, operand 4, single buffered']
    #allocation7 [shape = 's32[1]{0}', space=sflag, size = 0x4, scoped, tag = 'scoped memory for tpu_custom_call.1']
    #allocation8 [shape = 'u8[16384]{0}', space=vmem, size = 0x4000, scoped, tag = 'input window, operand 7, single buffered']
    #allocation9 [shape = 'u8[16384]{0}', space=vmem, size = 0x4000, scoped, tag = 'input window, operand 8, single buffered']
    #allocation10 [shape = 's32[1]{0}', space=sflag, size = 0x4, scoped, tag = 'scoped memory for tpu_custom_call.1']
    #allocation11 [shape = 'u8[16384]{0}', space=vmem, size = 0x4000, scoped, tag = 'input window, operand 10, single buffered']
    #allocation12 [shape = 'u8[8192]{0}', space=vmem, size = 0x2000, scoped, tag = 'output window, operand 0, single buffered']
    #allocation13 [shape = 'u8[1024]{0}', space=vmem, size = 0x400, scoped, tag = 'output window, operand 1, single buffered']
    #allocation14 [shape = 's32[1]{0}', space=sflag, size = 0x4, scoped, tag = 'scoped memory for tpu_custom_call.1']
    #allocation15 [shape = 'u8[1024]{0}', space=vmem, size = 0x400, scoped, tag = 'output window, operand 2, single buffered']
    %20 = vsyncpa [#allocation4], 0
    %21 = vsyncpa [#allocation7], 0
    %22 = vsyncpa [#allocation10], 0
    %23 = vsyncpa [#allocation5], 0
    %24 = vsyncpa [#allocation14], 0
    // Predicated region
    $region2: #{tpu_custom_call.1} parent=1 // pred_check
      _
    $region3: #{tpu_custom_call.1} parent=1 // pred_check_branch
      %26 = sbr.rel (0) target = $region5
    $region4: #{tpu_custom_call.1} parent=1 // pred_region
      _
    $region5: #{tpu_custom_call.1} parent=1 // pred_fallthru
      _
    // Predicated region
    $region6: #{tpu_custom_call.1} parent=1 // pred_check
      _
    $region7: #{tpu_custom_call.1} parent=1 // pred_check_branch
      %28 = sbr.rel (0) target = $region9
    $region8: #{tpu_custom_call.1} parent=1 // pred_region
      _
    $region9: #{tpu_custom_call.1} parent=1 // pred_fallthru
      _
    // Predicated region
    $region10: #{tpu_custom_call.1} parent=1 // pred_check
      _
    $region11: #{tpu_custom_call.1} parent=1 // pred_check_branch
      %30 = sbr.rel (0) target = $region13
    $region12: #{tpu_custom_call.1} parent=1 // pred_region
      %s32 = ssub.s32 32, 32
      %33 = vsyncadd [#allocation4], %s32
      %s35 = sshll.u32 [#allocation3], 4
      %s36 = int_to_ptr.vmem [resolvable:$true] %s35
      %38 = dma.hbm_to_vmem [thread:$0]  %s2, 32, %s36, [#allocation4]
    $region13: #{tpu_custom_call.1} parent=1 // pred_fallthru
      _
    // Predicated region
    $region14: #{tpu_custom_call.1} parent=1 // pred_check
      _
    $region15: #{tpu_custom_call.1} parent=1 // pred_check_branch
      %40 = sbr.rel (0) target = $region17
    $region16: #{tpu_custom_call.1} parent=1 // pred_region
      _
    $region17: #{tpu_custom_call.1} parent=1 // pred_fallthru
      _
    // Predicated region
    $region18: #{tpu_custom_call.1} parent=1 // pred_check
      _
    $region19: #{tpu_custom_call.1} parent=1 // pred_check_branch
      %42 = sbr.rel (0) target = $region21
    $region20: #{tpu_custom_call.1} parent=1 // pred_region
      %s44 = ssub.s32 16, 16
      %45 = vsyncadd [#allocation7], %s44
      %s47 = sshll.u32 [#allocation6], 4
      %s48 = int_to_ptr.vmem [resolvable:$true] %s47
      %50 = dma.hbm_to_vmem [thread:$0]  %s4, 16, %s48, [#allocation7]
    $region21: #{tpu_custom_call.1} parent=1 // pred_fallthru
      _
    // Predicated region
    $region22: #{tpu_custom_call.1} parent=1 // pred_check
      _
    $region23: #{tpu_custom_call.1} parent=1 // pred_check_branch
      %52 = sbr.rel (0) target = $region25
    $region24: #{tpu_custom_call.1} parent=1 // pred_region
      _
    $region25: #{tpu_custom_call.1} parent=1 // pred_fallthru
      _
    // Predicated region
    $region26: #{tpu_custom_call.1} parent=1 // pred_check
      _
    $region27: #{tpu_custom_call.1} parent=1 // pred_check_branch
      %54 = sbr.rel (0) target = $region29
    $region28: #{tpu_custom_call.1} parent=1 // pred_region
      _
    $region29: #{tpu_custom_call.1} parent=1 // pred_fallthru
      _
    // Predicated region
    $region30: #{tpu_custom_call.1} parent=1 // pred_check
      _
    $region31: #{tpu_custom_call.1} parent=1 // pred_check_branch
      %56 = sbr.rel (0) target = $region33
    $region32: #{tpu_custom_call.1} parent=1 // pred_region
      %s58 = ssub.s32 512, 512
      %59 = vsyncadd [#allocation7], %s58
      %s60 = sshll.u32 [#allocation8], 4
      %s61 = int_to_ptr.vmem [resolvable:$true] %s60
      %66 = dma.hbm_to_vmem [thread:$0]  %s7, 512, %s61, [#allocation7], 128, 128, 8
    $region33: #{tpu_custom_call.1} parent=1 // pred_fallthru
      _
    // Predicated region
    $region34: #{tpu_custom_call.1} parent=1 // pred_check
      _
    $region35: #{tpu_custom_call.1} parent=1 // pred_check_branch
      %68 = sbr.rel (0) target = $region37
    $region36: #{tpu_custom_call.1} parent=1 // pred_region
      %s70 = ssub.s32 512, 512
      %71 = vsyncadd [#allocation10], %s70
      %s72 = sshll.u32 [#allocation9], 4
      %s73 = int_to_ptr.vmem [resolvable:$true] %s72
      %78 = dma.hbm_to_vmem [thread:$0]  %s8, 512, %s73, [#allocation10], 128, 128, 8
    $region37: #{tpu_custom_call.1} parent=1 // pred_fallthru
      _
    // Predicated region
    $region38: #{tpu_custom_call.1} parent=1 // pred_check
      _
    $region39: #{tpu_custom_call.1} parent=1 // pred_check_branch
      %80 = sbr.rel (0) target = $region41
    $region40: #{tpu_custom_call.1} parent=1 // pred_region
      _
    $region41: #{tpu_custom_call.1} parent=1 // pred_fallthru
      _
    // Predicated region
    $region42: #{tpu_custom_call.1} parent=1 // pred_check
      _
    $region43: #{tpu_custom_call.1} parent=1 // pred_check_branch
      %82 = sbr.rel (0) target = $region45
    $region44: #{tpu_custom_call.1} parent=1 // pred_region
      %s84 = ssub.s32 512, 512
      %85 = vsyncadd [#allocation10], %s84
      %s86 = sshll.u32 [#allocation11], 4
      %s87 = int_to_ptr.vmem [resolvable:$true] %s86
      %92 = dma.hbm_to_vmem [thread:$0]  %s10, 512, %s87, [#allocation10], 128, 128, 8
    $region45: #{tpu_custom_call.1} parent=1 // pred_fallthru
      _
    // Predicated region
    $region46: #{tpu_custom_call.1} parent=1 // pred_check
      _
    $region47: #{tpu_custom_call.1} parent=1 // pred_check_branch
      %94 = sbr.rel (0) target = $region49
    $region48: #{tpu_custom_call.1} parent=1 // pred_region
      _
    $region49: #{tpu_custom_call.1} parent=1 // pred_fallthru
      _
    // Predicated region
    $region50: #{tpu_custom_call.1} parent=1 // pred_check
      _
    $region51: #{tpu_custom_call.1} parent=1 // pred_check_branch
      %96 = sbr.rel (0) target = $region53
    $region52: #{tpu_custom_call.1} parent=1 // pred_region
      %97 = dma.done [#allocation4], 32
    $region53: #{tpu_custom_call.1} parent=1 // pred_fallthru
      _
    // Predicated region
    $region54: #{tpu_custom_call.1} parent=1 // pred_check
      _
    $region55: #{tpu_custom_call.1} parent=1 // pred_check_branch
      %99 = sbr.rel (0) target = $region57
    $region56: #{tpu_custom_call.1} parent=1 // pred_region
      %100 = dma.done [#allocation7], 16
    $region57: #{tpu_custom_call.1} parent=1 // pred_fallthru
      _
    // Predicated region
    $region58: #{tpu_custom_call.1} parent=1 // pred_check
      _
    $region59: #{tpu_custom_call.1} parent=1 // pred_check_branch
      %102 = sbr.rel (0) target = $region61
    $region60: #{tpu_custom_call.1} parent=1 // pred_region
      %103 = dma.done [#allocation7], 512
    $region61: #{tpu_custom_call.1} parent=1 // pred_fallthru
      _
    // Predicated region
    $region62: #{tpu_custom_call.1} parent=1 // pred_check
      _
    $region63: #{tpu_custom_call.1} parent=1 // pred_check_branch
      %105 = sbr.rel (0) target = $region65
    $region64: #{tpu_custom_call.1} parent=1 // pred_region
      %106 = dma.done [#allocation10], 512
    $region65: #{tpu_custom_call.1} parent=1 // pred_fallthru
      _
    // Predicated region
    $region66: #{tpu_custom_call.1} parent=1 // pred_check
      _
    $region67: #{tpu_custom_call.1} parent=1 // pred_check_branch
      %108 = sbr.rel (0) target = $region69
    $region68: #{tpu_custom_call.1} parent=1 // pred_region
      %109 = dma.done [#allocation10], 512
    $region69: #{tpu_custom_call.1} parent=1 // pred_fallthru
      _
    %v110 = vld [vmem:[%s0] sm:$0xff]
    %v111 = vld [vmem:[%s0 + $0x8] sm:$0xff]
    %v112 = vld [vmem:[%s3] sm:$0xff]
    %v113 = vld [vmem:[#allocation6] sm:$0x1]
    %v115 = vlaneseq
    %v116 = vshrl.u32 %v115, 7
    %v117 = vsub.s32 0, %v116
    %v118 = vrot.slane %v113, %v117
    %vm120 = vcmask 64512
    %v122 = vsel %vm120, %v110, 0
    %v125 = vsel %vm120, %v111, 0
    %127 = vmatprep.subr.mxu0 0.0
    %128 = vmatpush1.msra.mxu0 %v112
    %129 = vmatprep.subr.mxu0 0.0
    %130 = vmatpush1.msra.mxu0 0.0
    %131 = vmatprep.subr.mxu0 0.0
    %132 = vmatpush1.msra.mxu0 0.0
    %133 = vmatprep.subr.mxu0 0.0
    %134 = vmatpush1.msra.mxu0 0.0
    %135 = vmatprep.subr.mxu0 0.0
    %136 = vmatpush1.msra.mxu0 0.0
    %137 = vmatprep.subr.mxu0 0.0
    %138 = vmatpush1.msra.mxu0 0.0
    %139 = vmatprep.subr.mxu0 0.0
    %140 = vmatpush1.msra.mxu0 0.0
    %141 = vmatprep.subr.mxu0 0.0
    %142 = vmatpush1.msra.mxu0 0.0
    %143 = vmatprep.subr.mxu0 0.0
    %144 = vmatpush1.msra.mxu0 0.0
    %145 = vmatprep.subr.mxu0 0.0
    %146 = vmatpush1.msra.mxu0 0.0
    %147 = vmatprep.subr.mxu0 0.0
    %148 = vmatpush1.msra.mxu0 0.0
    %149 = vmatprep.subr.mxu0 0.0
    %150 = vmatpush1.msra.mxu0 0.0
    %151 = vmatprep.subr.mxu0 0.0
    %152 = vmatpush1.msra.mxu0 0.0
    %153 = vmatprep.subr.mxu0 0.0
    %154 = vmatpush1.msra.mxu0 0.0
    %155 = vmatprep.subr.mxu0 0.0
    %156 = vmatpush1.msra.mxu0 0.0
    %157 = vmatprep.subr.mxu0 0.0
    %158 = vmatpush1.msra.mxu0 0.0
    %159 = vmatprep.subr.mxu0 0.0
    %160 = vmatpush1.msra.mxu0 0.0
    %161 = vmatprep.subr.mxu0 0.0
    %162 = vmatpush1.msra.mxu0 0.0
    %163 = vmatprep.subr.mxu0 0.0
    %164 = vmatpush1.msra.mxu0 0.0
    %165 = vmatprep.subr.mxu0 0.0
    %166 = vmatpush1.msra.mxu0 0.0
    %167 = vmatprep.subr.mxu0 0.0
    %168 = vmatpush1.msra.mxu0 0.0
    %169 = vmatprep.subr.mxu0 0.0
    %170 = vmatpush1.msra.mxu0 0.0
    %171 = vmatprep.subr.mxu0 0.0
    %172 = vmatpush1.msra.mxu0 0.0
    %173 = vmatprep.subr.mxu0 0.0
    %174 = vmatpush1.msra.mxu0 0.0
    %175 = vmatprep.subr.mxu0 0.0
    %176 = vmatpush1.msra.mxu0 0.0
    %177 = vmatprep.subr.mxu0 0.0
    %178 = vmatpush1.msra.mxu0 0.0
    %179 = vmatprep.subr.mxu0 0.0
    %180 = vmatpush1.msra.mxu0 0.0
    %181 = vmatprep.subr.mxu0 0.0
    %182 = vmatpush1.msra.mxu0 0.0
    %183 = vmatprep.subr.mxu0 0.0
    %184 = vmatpush1.msra.mxu0 0.0
    %185 = vmatprep.subr.mxu0 0.0
    %186 = vmatpush1.msra.mxu0 0.0
    %187 = vmatprep.subr.mxu0 0.0
    %188 = vmatpush1.msra.mxu0 0.0
    %189 = vmatprep.subr.mxu0 0.0
    %190 = vmatpush1.msra.mxu0 0.0
    %191 = vmatprep.mubr.f32.mxu0 0.0
    %192 = vmatmul.mubr.f32.gmra.mrb[0].mxu0 %v122
    %v193 = vpop.f32.mrb[0].mxu0
    %v194 = vadd.f32 %v118, %v193
    %v195 = vpop.f32.mrb[0].mxu0
    %196 = vmatprep.mubr.f32.mxu0 0.0
    %197 = vmatmul.mubr.f32.gmra.mrb[0].mxu0 %v125
    %v198 = vpop.f32.mrb[0].mxu0
    %v199 = vadd.f32 %v118, %v198
    %v200 = vpop.f32.mrb[0].mxu0
    %201 = vdwg.mxu0
    %vm202 = vcmp.gt.f32.partialorder %v194, 0.0
    %vm203 = vcmp.gt.f32.partialorder %v199, 0.0
    %v204 = vmul.f32 %v194, 0.01
    %v205 = vmul.f32 %v199, 0.01
    %v206 = vsel %vm202, %v194, %v204
    %v207 = vsel %vm203, %v199, %v205
    %v208 = vld [vmem:[%s5] sm:$0xff]
    %v209 = vld [vmem:[%s5 + $0x8] sm:$0xff]
    %v210 = vld [vmem:[%s5 + $0x10] sm:$0xff]
    %v211 = vld [vmem:[%s5 + $0x18] sm:$0xff]
    %v212 = vld [vmem:[%s6] sm:$0x1]
    %v214 = vlaneseq
    %v215 = vshrl.u32 %v214, 7
    %v216 = vsub.s32 0, %v215
    %v217 = vrot.slane %v212, %v216
    %vm219 = vcmask 261120
    %v221 = vsel %vm219, %v206, 0
    %v224 = vsel %vm219, %v207, 0
    %226 = vmatprep.subr.mxu0 0.0
    %227 = vmatpush1.msra.mxu0 %v208
    %228 = vmatprep.subr.mxu0 0.0
    %229 = vmatpush1.msra.mxu0 %v209
    %230 = vmatprep.subr.mxu0 0.0
    %231 = vmatpush1.msra.mxu0 %v210
    %232 = vmatprep.subr.mxu0 0.0
    %233 = vmatpush1.msra.mxu0 %v211
    %234 = vmatprep.subr.mxu0 0.0
    %235 = vmatpush1.msra.mxu0 0.0
    %236 = vmatprep.subr.mxu0 0.0
    %237 = vmatpush1.msra.mxu0 0.0
    %238 = vmatprep.subr.mxu0 0.0
    %239 = vmatpush1.msra.mxu0 0.0
    %240 = vmatprep.subr.mxu0 0.0
    %241 = vmatpush1.msra.mxu0 0.0
    %242 = vmatprep.subr.mxu0 0.0
    %243 = vmatpush1.msra.mxu0 0.0
    %244 = vmatprep.subr.mxu0 0.0
    %245 = vmatpush1.msra.mxu0 0.0
    %246 = vmatprep.subr.mxu0 0.0
    %247 = vmatpush1.msra.mxu0 0.0
    %248 = vmatprep.subr.mxu0 0.0
    %249 = vmatpush1.msra.mxu0 0.0
    %250 = vmatprep.subr.mxu0 0.0
    %251 = vmatpush1.msra.mxu0 0.0
    %252 = vmatprep.subr.mxu0 0.0
    %253 = vmatpush1.msra.mxu0 0.0
    %254 = vmatprep.subr.mxu0 0.0
    %255 = vmatpush1.msra.mxu0 0.0
    %256 = vmatprep.subr.mxu0 0.0
    %257 = vmatpush1.msra.mxu0 0.0
    %258 = vmatprep.subr.mxu0 0.0
    %259 = vmatpush1.msra.mxu0 0.0
    %260 = vmatprep.subr.mxu0 0.0
    %261 = vmatpush1.msra.mxu0 0.0
    %262 = vmatprep.subr.mxu0 0.0
    %263 = vmatpush1.msra.mxu0 0.0
    %264 = vmatprep.subr.mxu0 0.0
    %265 = vmatpush1.msra.mxu0 0.0
    %266 = vmatprep.subr.mxu0 0.0
    %267 = vmatpush1.msra.mxu0 0.0
    %268 = vmatprep.subr.mxu0 0.0
    %269 = vmatpush1.msra.mxu0 0.0
    %270 = vmatprep.subr.mxu0 0.0
    %271 = vmatpush1.msra.mxu0 0.0
    %272 = vmatprep.subr.mxu0 0.0
    %273 = vmatpush1.msra.mxu0 0.0
    %274 = vmatprep.subr.mxu0 0.0
    %275 = vmatpush1.msra.mxu0 0.0
    %276 = vmatprep.subr.mxu0 0.0
    %277 = vmatpush1.msra.mxu0 0.0
    %278 = vmatprep.subr.mxu0 0.0
    %279 = vmatpush1.msra.mxu0 0.0
    %280 = vmatprep.subr.mxu0 0.0
    %281 = vmatpush1.msra.mxu0 0.0
    %282 = vmatprep.subr.mxu0 0.0
    %283 = vmatpush1.msra.mxu0 0.0
    %284 = vmatprep.subr.mxu0 0.0
    %285 = vmatpush1.msra.mxu0 0.0
    %286 = vmatprep.subr.mxu0 0.0
    %287 = vmatpush1.msra.mxu0 0.0
    %288 = vmatprep.subr.mxu0 0.0
    %289 = vmatpush1.msra.mxu0 0.0
    %290 = vmatprep.mubr.f32.mxu0 0.0
    %291 = vmatmul.mubr.f32.gmra.mrb[0].mxu0 %v221
    %v292 = vpop.f32.mrb[0].mxu0
    %v293 = vadd.f32 %v217, %v292
    %v294 = vpop.f32.mrb[0].mxu0
    %295 = vmatprep.mubr.f32.mxu0 0.0
    %296 = vmatmul.mubr.f32.gmra.mrb[0].mxu0 %v224
    %v297 = vpop.f32.mrb[0].mxu0
    %v298 = vadd.f32 %v217, %v297
    %v299 = vpop.f32.mrb[0].mxu0
    %300 = vdwg.mxu0
    %vm301 = vcmp.gt.f32.partialorder %v293, 0.0
    %vm302 = vcmp.gt.f32.partialorder %v298, 0.0
    %v303 = vmul.f32 %v293, 0.01
    %v304 = vmul.f32 %v298, 0.01
    %v305 = vsel %vm301, %v293, %v303
    %v306 = vsel %vm302, %v298, %v304
    %v307 = vld [vmem:[#allocation8] sm:$0xff]
    %v308 = vld [vmem:[#allocation8 + $0x8] sm:$0xff]
    %v309 = vld [vmem:[#allocation8 + $0x10] sm:$0xff]
    %v310 = vld [vmem:[#allocation8 + $0x18] sm:$0xff]
    %v311 = vld [vmem:[%s9] sm:$0x1]
    %v313 = vlaneseq
    %v314 = vshrl.u32 %v313, 7
    %v315 = vsub.s32 0, %v314
    %v316 = vrot.slane %v311, %v315
    %v319 = vsel %vm219, %v305, 0
    %v322 = vsel %vm219, %v306, 0
    %324 = vmatprep.subr.mxu0 0.0
    %325 = vmatpush1.msra.mxu0 %v307
    %326 = vmatprep.subr.mxu0 0.0
    %327 = vmatpush1.msra.mxu0 %v308
    %328 = vmatprep.subr.mxu0 0.0
    %329 = vmatpush1.msra.mxu0 %v309
    %330 = vmatprep.subr.mxu0 0.0
    %331 = vmatpush1.msra.mxu0 %v310
    %332 = vmatprep.subr.mxu0 0.0
    %333 = vmatpush1.msra.mxu0 0.0
    %334 = vmatprep.subr.mxu0 0.0
    %335 = vmatpush1.msra.mxu0 0.0
    %336 = vmatprep.subr.mxu0 0.0
    %337 = vmatpush1.msra.mxu0 0.0
    %338 = vmatprep.subr.mxu0 0.0
    %339 = vmatpush1.msra.mxu0 0.0
    %340 = vmatprep.subr.mxu0 0.0
    %341 = vmatpush1.msra.mxu0 0.0
    %342 = vmatprep.subr.mxu0 0.0
    %343 = vmatpush1.msra.mxu0 0.0
    %344 = vmatprep.subr.mxu0 0.0
    %345 = vmatpush1.msra.mxu0 0.0
    %346 = vmatprep.subr.mxu0 0.0
    %347 = vmatpush1.msra.mxu0 0.0
    %348 = vmatprep.subr.mxu0 0.0
    %349 = vmatpush1.msra.mxu0 0.0
    %350 = vmatprep.subr.mxu0 0.0
    %351 = vmatpush1.msra.mxu0 0.0
    %352 = vmatprep.subr.mxu0 0.0
    %353 = vmatpush1.msra.mxu0 0.0
    %354 = vmatprep.subr.mxu0 0.0
    %355 = vmatpush1.msra.mxu0 0.0
    %356 = vmatprep.subr.mxu0 0.0
    %357 = vmatpush1.msra.mxu0 0.0
    %358 = vmatprep.subr.mxu0 0.0
    %359 = vmatpush1.msra.mxu0 0.0
    %360 = vmatprep.subr.mxu0 0.0
    %361 = vmatpush1.msra.mxu0 0.0
    %362 = vmatprep.subr.mxu0 0.0
    %363 = vmatpush1.msra.mxu0 0.0
    %364 = vmatprep.subr.mxu0 0.0
    %365 = vmatpush1.msra.mxu0 0.0
    %366 = vmatprep.subr.mxu0 0.0
    %367 = vmatpush1.msra.mxu0 0.0
    %368 = vmatprep.subr.mxu0 0.0
    %369 = vmatpush1.msra.mxu0 0.0
    %370 = vmatprep.subr.mxu0 0.0
    %371 = vmatpush1.msra.mxu0 0.0
    %372 = vmatprep.subr.mxu0 0.0
    %373 = vmatpush1.msra.mxu0 0.0
    %374 = vmatprep.subr.mxu0 0.0
    %375 = vmatpush1.msra.mxu0 0.0
    %376 = vmatprep.subr.mxu0 0.0
    %377 = vmatpush1.msra.mxu0 0.0
    %378 = vmatprep.subr.mxu0 0.0
    %379 = vmatpush1.msra.mxu0 0.0
    %380 = vmatprep.subr.mxu0 0.0
    %381 = vmatpush1.msra.mxu0 0.0
    %382 = vmatprep.subr.mxu0 0.0
    %383 = vmatpush1.msra.mxu0 0.0
    %384 = vmatprep.subr.mxu0 0.0
    %385 = vmatpush1.msra.mxu0 0.0
    %386 = vmatprep.subr.mxu0 0.0
    %387 = vmatpush1.msra.mxu0 0.0
    %388 = vmatprep.mubr.f32.mxu0 0.0
    %389 = vmatmul.mubr.f32.gmra.mrb[0].mxu0 %v319
    %v390 = vpop.f32.mrb[0].mxu0
    %v391 = vadd.f32 %v316, %v390
    %v392 = vpop.f32.mrb[0].mxu0
    %393 = vmatprep.mubr.f32.mxu0 0.0
    %394 = vmatmul.mubr.f32.gmra.mrb[0].mxu0 %v322
    %v395 = vpop.f32.mrb[0].mxu0
    %v396 = vadd.f32 %v316, %v395
    %v397 = vpop.f32.mrb[0].mxu0
    %398 = vdwg.mxu0
    %v399 = vld [vmem:[%s1] sm:$0x3]
    %v400 = vld [vmem:[#allocation3] sm:$0x3]
    %v401 = vld [vmem:[#allocation9] sm:$0xff]
    %v402 = vld [vmem:[#allocation9 + $0x8] sm:$0xff]
    %v403 = vld [vmem:[#allocation9 + $0x10] sm:$0xff]
    %v404 = vld [vmem:[#allocation9 + $0x18] sm:$0xff]
    %v406 = vsel %vm219, %v399, 0
    %408 = vmatprep.subr.mxu0 0.0
    %409 = vmatpush1.msra.mxu0 %v401
    %410 = vmatprep.subr.mxu0 0.0
    %411 = vmatpush1.msra.mxu0 %v402
    %412 = vmatprep.subr.mxu0 0.0
    %413 = vmatpush1.msra.mxu0 %v403
    %414 = vmatprep.subr.mxu0 0.0
    %415 = vmatpush1.msra.mxu0 %v404
    %416 = vmatprep.subr.mxu0 0.0
    %417 = vmatpush1.msra.mxu0 0.0
    %418 = vmatprep.subr.mxu0 0.0
    %419 = vmatpush1.msra.mxu0 0.0
    %420 = vmatprep.subr.mxu0 0.0
    %421 = vmatpush1.msra.mxu0 0.0
    %422 = vmatprep.subr.mxu0 0.0
    %423 = vmatpush1.msra.mxu0 0.0
    %424 = vmatprep.subr.mxu0 0.0
    %425 = vmatpush1.msra.mxu0 0.0
    %426 = vmatprep.subr.mxu0 0.0
    %427 = vmatpush1.msra.mxu0 0.0
    %428 = vmatprep.subr.mxu0 0.0
    %429 = vmatpush1.msra.mxu0 0.0
    %430 = vmatprep.subr.mxu0 0.0
    %431 = vmatpush1.msra.mxu0 0.0
    %432 = vmatprep.subr.mxu0 0.0
    %433 = vmatpush1.msra.mxu0 0.0
    %434 = vmatprep.subr.mxu0 0.0
    %435 = vmatpush1.msra.mxu0 0.0
    %436 = vmatprep.subr.mxu0 0.0
    %437 = vmatpush1.msra.mxu0 0.0
    %438 = vmatprep.subr.mxu0 0.0
    %439 = vmatpush1.msra.mxu0 0.0
    %440 = vmatprep.subr.mxu0 0.0
    %441 = vmatpush1.msra.mxu0 0.0
    %442 = vmatprep.subr.mxu0 0.0
    %443 = vmatpush1.msra.mxu0 0.0
    %444 = vmatprep.subr.mxu0 0.0
    %445 = vmatpush1.msra.mxu0 0.0
    %446 = vmatprep.subr.mxu0 0.0
    %447 = vmatpush1.msra.mxu0 0.0
    %448 = vmatprep.subr.mxu0 0.0
    %449 = vmatpush1.msra.mxu0 0.0
    %450 = vmatprep.subr.mxu0 0.0
    %451 = vmatpush1.msra.mxu0 0.0
    %452 = vmatprep.subr.mxu0 0.0
    %453 = vmatpush1.msra.mxu0 0.0
    %454 = vmatprep.subr.mxu0 0.0
    %455 = vmatpush1.msra.mxu0 0.0
    %456 = vmatprep.subr.mxu0 0.0
    %457 = vmatpush1.msra.mxu0 0.0
    %458 = vmatprep.subr.mxu0 0.0
    %459 = vmatpush1.msra.mxu0 0.0
    %460 = vmatprep.subr.mxu0 0.0
    %461 = vmatpush1.msra.mxu0 0.0
    %462 = vmatprep.subr.mxu0 0.0
    %463 = vmatpush1.msra.mxu0 0.0
    %464 = vmatprep.subr.mxu0 0.0
    %465 = vmatpush1.msra.mxu0 0.0
    %466 = vmatprep.subr.mxu0 0.0
    %467 = vmatpush1.msra.mxu0 0.0
    %468 = vmatprep.subr.mxu0 0.0
    %469 = vmatpush1.msra.mxu0 0.0
    %470 = vmatprep.subr.mxu0 0.0
    %471 = vmatpush1.msra.mxu0 0.0
    %472 = vmatprep.mubr.f32.mxu0 0.0
    %473 = vmatmul.mubr.f32.gmra.mrb[0].mxu0 %v406
    %v474 = vpop.f32.mrb[0].mxu0
    %v475 = vadd.f32 0.0, %v474
    %v476 = vpop.f32.mrb[0].mxu0
    %477 = vdwg.mxu0
    %v478 = vadd.f32 %v391, %v475
    %v479 = vxor.u32 %v478, 2147483648
    %v480 = vmul.f32 %v479, 1.442695
    %v481 = vpow.pop %v480
    %v482 = vadd.f32 %v481, 1.0
    %v483 = vrcp.pop %v482
    %v484 = vmul.f32 1.0, %v483
    %v485 = vtanh.pop %v478
    %487 = vrot.lane.b32.xlu0 %v400, 32
    %v488 = vpop.permute.xlu0 %487
    %v490 = vmul.f32 %v484, %v488
    %492 = vrot.lane.b32.xlu0 %v485, 64
    %v493 = vpop.permute.xlu0 %492
    %v495 = vmul.f32 %v484, %v493
    %497 = vrot.lane.b32.xlu0 %v495, 32
    %v498 = vpop.permute.xlu0 %497
    %v500 = vadd.f32 %v490, %v498
    %v501 = vtanh.pop %v500
    %503 = vrot.lane.b32.xlu0 %v501, 64
    %v504 = vpop.permute.xlu0 %503
    %v506 = vmul.f32 %v484, %v504
    %508 = vrot.lane.b32.xlu0 %v506, 32
    %v509 = vpop.permute.xlu0 %508
    %vm511 = vcmask 254976
    %512 = vst.msk [vmem:[#allocation2] sm:$0x3] %vm511, %v509
    %v513 = vsel %vm219, %v509, 0
    %515 = vmatprep.subr.mxu0 0.0
    %516 = vmatpush1.msra.mxu0 %v401
    %517 = vmatprep.subr.mxu0 0.0
    %518 = vmatpush1.msra.mxu0 %v402
    %519 = vmatprep.subr.mxu0 0.0
    %520 = vmatpush1.msra.mxu0 %v403
    %521 = vmatprep.subr.mxu0 0.0
    %522 = vmatpush1.msra.mxu0 %v404
    %523 = vmatprep.subr.mxu0 0.0
    %524 = vmatpush1.msra.mxu0 0.0
    %525 = vmatprep.subr.mxu0 0.0
    %526 = vmatpush1.msra.mxu0 0.0
    %527 = vmatprep.subr.mxu0 0.0
    %528 = vmatpush1.msra.mxu0 0.0
    %529 = vmatprep.subr.mxu0 0.0
    %530 = vmatpush1.msra.mxu0 0.0
    %531 = vmatprep.subr.mxu0 0.0
    %532 = vmatpush1.msra.mxu0 0.0
    %533 = vmatprep.subr.mxu0 0.0
    %534 = vmatpush1.msra.mxu0 0.0
    %535 = vmatprep.subr.mxu0 0.0
    %536 = vmatpush1.msra.mxu0 0.0
    %537 = vmatprep.subr.mxu0 0.0
    %538 = vmatpush1.msra.mxu0 0.0
    %539 = vmatprep.subr.mxu0 0.0
    %540 = vmatpush1.msra.mxu0 0.0
    %541 = vmatprep.subr.mxu0 0.0
    %542 = vmatpush1.msra.mxu0 0.0
    %543 = vmatprep.subr.mxu0 0.0
    %544 = vmatpush1.msra.mxu0 0.0
    %545 = vmatprep.subr.mxu0 0.0
    %546 = vmatpush1.msra.mxu0 0.0
    %547 = vmatprep.subr.mxu0 0.0
    %548 = vmatpush1.msra.mxu0 0.0
    %549 = vmatprep.subr.mxu0 0.0
    %550 = vmatpush1.msra.mxu0 0.0
    %551 = vmatprep.subr.mxu0 0.0
    %552 = vmatpush1.msra.mxu0 0.0
    %553 = vmatprep.subr.mxu0 0.0
    %554 = vmatpush1.msra.mxu0 0.0
    %555 = vmatprep.subr.mxu0 0.0
    %556 = vmatpush1.msra.mxu0 0.0
    %557 = vmatprep.subr.mxu0 0.0
    %558 = vmatpush1.msra.mxu0 0.0
    %559 = vmatprep.subr.mxu0 0.0
    %560 = vmatpush1.msra.mxu0 0.0
    %561 = vmatprep.subr.mxu0 0.0
    %562 = vmatpush1.msra.mxu0 0.0
    %563 = vmatprep.subr.mxu0 0.0
    %564 = vmatpush1.msra.mxu0 0.0
    %565 = vmatprep.subr.mxu0 0.0
    %566 = vmatpush1.msra.mxu0 0.0
    %567 = vmatprep.subr.mxu0 0.0
    %568 = vmatpush1.msra.mxu0 0.0
    %569 = vmatprep.subr.mxu0 0.0
    %570 = vmatpush1.msra.mxu0 0.0
    %571 = vmatprep.subr.mxu0 0.0
    %572 = vmatpush1.msra.mxu0 0.0
    %573 = vmatprep.subr.mxu0 0.0
    %574 = vmatpush1.msra.mxu0 0.0
    %575 = vmatprep.subr.mxu0 0.0
    %576 = vmatpush1.msra.mxu0 0.0
    %577 = vmatprep.subr.mxu0 0.0
    %578 = vmatpush1.msra.mxu0 0.0
    %579 = vmatprep.mubr.f32.mxu0 0.0
    %580 = vmatmul.mubr.f32.gmra.mrb[0].mxu0 %v513
    %v581 = vpop.f32.mrb[0].mxu0
    %v582 = vadd.f32 0.0, %v581
    %v583 = vpop.f32.mrb[0].mxu0
    %584 = vdwg.mxu0
    %v586 = vrot.slane %v582, 6
    %v588 = vadd.f32 %v391, %v586
    %v589 = vxor.u32 %v588, 2147483648
    %v590 = vmul.f32 %v589, 1.442695
    %v591 = vpow.pop %v590
    %v592 = vadd.f32 %v591, 1.0
    %v593 = vrcp.pop %v592
    %v594 = vmul.f32 1.0, %v593
    %v595 = vtanh.pop %v588
    %v597 = vrot.slane %v500, 6
    %v599 = vmul.f32 %v594, %v597
    %601 = vrot.lane.b32.xlu0 %v595, 64
    %v602 = vpop.permute.xlu0 %601
    %v604 = vmul.f32 %v594, %v602
    %606 = vrot.lane.b32.xlu0 %v604, 32
    %v607 = vpop.permute.xlu0 %606
    %v609 = vadd.f32 %v599, %v607
    %v610 = vtanh.pop %v609
    %612 = vrot.lane.b32.xlu0 %v610, 64
    %v613 = vpop.permute.xlu0 %612
    %v615 = vmul.f32 %v594, %v613
    %617 = vrot.lane.b32.xlu0 %v615, 32
    %v618 = vpop.permute.xlu0 %617
    %vm620 = vcmask 257026
    %621 = vst.msk [vmem:[#allocation2] sm:$0xc] %vm620, %v618
    %v622 = vrot.slane %v615, 2
    %623 = vrot.lane.b32.xlu0 %v622, 32
    %v624 = vpop.permute.xlu0 %623
    %v625 = vsel %vm219, %v624, 0
    %627 = vmatprep.subr.mxu0 0.0
    %628 = vmatpush1.msra.mxu0 %v401
    %629 = vmatprep.subr.mxu0 0.0
    %630 = vmatpush1.msra.mxu0 %v402
    %631 = vmatprep.subr.mxu0 0.0
    %632 = vmatpush1.msra.mxu0 %v403
    %633 = vmatprep.subr.mxu0 0.0
    %634 = vmatpush1.msra.mxu0 %v404
    %635 = vmatprep.subr.mxu0 0.0
    %636 = vmatpush1.msra.mxu0 0.0
    %637 = vmatprep.subr.mxu0 0.0
    %638 = vmatpush1.msra.mxu0 0.0
    %639 = vmatprep.subr.mxu0 0.0
    %640 = vmatpush1.msra.mxu0 0.0
    %641 = vmatprep.subr.mxu0 0.0
    %642 = vmatpush1.msra.mxu0 0.0
    %643 = vmatprep.subr.mxu0 0.0
    %644 = vmatpush1.msra.mxu0 0.0
    %645 = vmatprep.subr.mxu0 0.0
    %646 = vmatpush1.msra.mxu0 0.0
    %647 = vmatprep.subr.mxu0 0.0
    %648 = vmatpush1.msra.mxu0 0.0
    %649 = vmatprep.subr.mxu0 0.0
    %650 = vmatpush1.msra.mxu0 0.0
    %651 = vmatprep.subr.mxu0 0.0
    %652 = vmatpush1.msra.mxu0 0.0
    %653 = vmatprep.subr.mxu0 0.0
    %654 = vmatpush1.msra.mxu0 0.0
    %655 = vmatprep.subr.mxu0 0.0
    %656 = vmatpush1.msra.mxu0 0.0
    %657 = vmatprep.subr.mxu0 0.0
    %658 = vmatpush1.msra.mxu0 0.0
    %659 = vmatprep.subr.mxu0 0.0
    %660 = vmatpush1.msra.mxu0 0.0
    %661 = vmatprep.subr.mxu0 0.0
    %662 = vmatpush1.msra.mxu0 0.0
    %663 = vmatprep.subr.mxu0 0.0
    %664 = vmatpush1.msra.mxu0 0.0
    %665 = vmatprep.subr.mxu0 0.0
    %666 = vmatpush1.msra.mxu0 0.0
    %667 = vmatprep.subr.mxu0 0.0
    %668 = vmatpush1.msra.mxu0 0.0
    %669 = vmatprep.subr.mxu0 0.0
    %670 = vmatpush1.msra.mxu0 0.0
    %671 = vmatprep.subr.mxu0 0.0
    %672 = vmatpush1.msra.mxu0 0.0
    %673 = vmatprep.subr.mxu0 0.0
    %674 = vmatpush1.msra.mxu0 0.0
    %675 = vmatprep.subr.mxu0 0.0
    %676 = vmatpush1.msra.mxu0 0.0
    %677 = vmatprep.subr.mxu0 0.0
    %678 = vmatpush1.msra.mxu0 0.0
    %679 = vmatprep.subr.mxu0 0.0
    %680 = vmatpush1.msra.mxu0 0.0
    %681 = vmatprep.subr.mxu0 0.0
    %682 = vmatpush1.msra.mxu0 0.0
    %683 = vmatprep.subr.mxu0 0.0
    %684 = vmatpush1.msra.mxu0 0.0
    %685 = vmatprep.subr.mxu0 0.0
    %686 = vmatpush1.msra.mxu0 0.0
    %687 = vmatprep.subr.mxu0 0.0
    %688 = vmatpush1.msra.mxu0 0.0
    %689 = vmatprep.subr.mxu0 0.0
    %690 = vmatpush1.msra.mxu0 0.0
    %691 = vmatprep.mubr.f32.mxu0 0.0
    %692 = vmatmul.mubr.f32.gmra.mrb[0].mxu0 %v625
    %v693 = vpop.f32.mrb[0].mxu0
    %v694 = vadd.f32 0.0, %v693
    %v695 = vpop.f32.mrb[0].mxu0
    %696 = vdwg.mxu0
    %v698 = vrot.slane %v694, 4
    %v700 = vadd.f32 %v391, %v698
    %v701 = vxor.u32 %v700, 2147483648
    %v702 = vmul.f32 %v701, 1.442695
    %v703 = vpow.pop %v702
    %v704 = vadd.f32 %v703, 1.0
    %v705 = vrcp.pop %v704
    %v706 = vmul.f32 1.0, %v705
    %v707 = vtanh.pop %v700
    %v709 = vrot.slane %v609, 6
    %v711 = vmul.f32 %v706, %v709
    %713 = vrot.lane.b32.xlu0 %v707, 64
    %v714 = vpop.permute.xlu0 %713
    %v716 = vmul.f32 %v706, %v714
    %718 = vrot.lane.b32.xlu0 %v716, 32
    %v719 = vpop.permute.xlu0 %718
    %v721 = vadd.f32 %v711, %v719
    %v722 = vtanh.pop %v721
    %724 = vrot.lane.b32.xlu0 %v722, 64
    %v725 = vpop.permute.xlu0 %724
    %v727 = vmul.f32 %v706, %v725
    %729 = vrot.lane.b32.xlu0 %v727, 32
    %v730 = vpop.permute.xlu0 %729
    %vm732 = vcmask 259076
    %733 = vst.msk [vmem:[#allocation2] sm:$0x30] %vm732, %v730
    %v734 = vrot.slane %v727, 4
    %735 = vrot.lane.b32.xlu0 %v734, 32
    %v736 = vpop.permute.xlu0 %735
    %v737 = vsel %vm219, %v736, 0
    %739 = vmatprep.subr.mxu0 0.0
    %740 = vmatpush1.msra.mxu0 %v401
    %741 = vmatprep.subr.mxu0 0.0
    %742 = vmatpush1.msra.mxu0 %v402
    %743 = vmatprep.subr.mxu0 0.0
    %744 = vmatpush1.msra.mxu0 %v403
    %745 = vmatprep.subr.mxu0 0.0
    %746 = vmatpush1.msra.mxu0 %v404
    %747 = vmatprep.subr.mxu0 0.0
    %748 = vmatpush1.msra.mxu0 0.0
    %749 = vmatprep.subr.mxu0 0.0
    %750 = vmatpush1.msra.mxu0 0.0
    %751 = vmatprep.subr.mxu0 0.0
    %752 = vmatpush1.msra.mxu0 0.0
    %753 = vmatprep.subr.mxu0 0.0
    %754 = vmatpush1.msra.mxu0 0.0
    %755 = vmatprep.subr.mxu0 0.0
    %756 = vmatpush1.msra.mxu0 0.0
    %757 = vmatprep.subr.mxu0 0.0
    %758 = vmatpush1.msra.mxu0 0.0
    %759 = vmatprep.subr.mxu0 0.0
    %760 = vmatpush1.msra.mxu0 0.0
    %761 = vmatprep.subr.mxu0 0.0
    %762 = vmatpush1.msra.mxu0 0.0
    %763 = vmatprep.subr.mxu0 0.0
    %764 = vmatpush1.msra.mxu0 0.0
    %765 = vmatprep.subr.mxu0 0.0
    %766 = vmatpush1.msra.mxu0 0.0
    %767 = vmatprep.subr.mxu0 0.0
    %768 = vmatpush1.msra.mxu0 0.0
    %769 = vmatprep.subr.mxu0 0.0
    %770 = vmatpush1.msra.mxu0 0.0
    %771 = vmatprep.subr.mxu0 0.0
    %772 = vmatpush1.msra.mxu0 0.0
    %773 = vmatprep.subr.mxu0 0.0
    %774 = vmatpush1.msra.mxu0 0.0
    %775 = vmatprep.subr.mxu0 0.0
    %776 = vmatpush1.msra.mxu0 0.0
    %777 = vmatprep.subr.mxu0 0.0
    %778 = vmatpush1.msra.mxu0 0.0
    %779 = vmatprep.subr.mxu0 0.0
    %780 = vmatpush1.msra.mxu0 0.0
    %781 = vmatprep.subr.mxu0 0.0
    %782 = vmatpush1.msra.mxu0 0.0
    %783 = vmatprep.subr.mxu0 0.0
    %784 = vmatpush1.msra.mxu0 0.0
    %785 = vmatprep.subr.mxu0 0.0
    %786 = vmatpush1.msra.mxu0 0.0
    %787 = vmatprep.subr.mxu0 0.0
    %788 = vmatpush1.msra.mxu0 0.0
    %789 = vmatprep.subr.mxu0 0.0
    %790 = vmatpush1.msra.mxu0 0.0
    %791 = vmatprep.subr.mxu0 0.0
    %792 = vmatpush1.msra.mxu0 0.0
    %793 = vmatprep.subr.mxu0 0.0
    %794 = vmatpush1.msra.mxu0 0.0
    %795 = vmatprep.subr.mxu0 0.0
    %796 = vmatpush1.msra.mxu0 0.0
    %797 = vmatprep.subr.mxu0 0.0
    %798 = vmatpush1.msra.mxu0 0.0
    %799 = vmatprep.subr.mxu0 0.0
    %800 = vmatpush1.msra.mxu0 0.0
    %801 = vmatprep.subr.mxu0 0.0
    %802 = vmatpush1.msra.mxu0 0.0
    %803 = vmatprep.mubr.f32.mxu0 0.0
    %804 = vmatmul.mubr.f32.gmra.mrb[0].mxu0 %v737
    %v805 = vpop.f32.mrb[0].mxu0
    %v806 = vadd.f32 0.0, %v805
    %v807 = vpop.f32.mrb[0].mxu0
    %808 = vdwg.mxu0
    %v810 = vrot.slane %v806, 2
    %v812 = vadd.f32 %v391, %v810
    %v813 = vxor.u32 %v812, 2147483648
    %v814 = vmul.f32 %v813, 1.442695
    %v815 = vpow.pop %v814
    %v816 = vadd.f32 %v815, 1.0
    %v817 = vrcp.pop %v816
    %v818 = vmul.f32 1.0, %v817
    %v819 = vtanh.pop %v812
    %v821 = vrot.slane %v721, 6
    %v823 = vmul.f32 %v818, %v821
    %825 = vrot.lane.b32.xlu0 %v819, 64
    %v826 = vpop.permute.xlu0 %825
    %v828 = vmul.f32 %v818, %v826
    %830 = vrot.lane.b32.xlu0 %v828, 32
    %v831 = vpop.permute.xlu0 %830
    %v833 = vadd.f32 %v823, %v831
    %v834 = vtanh.pop %v833
    %836 = vrot.lane.b32.xlu0 %v834, 64
    %v837 = vpop.permute.xlu0 %836
    %v839 = vmul.f32 %v818, %v837
    %841 = vrot.lane.b32.xlu0 %v839, 32
    %v842 = vpop.permute.xlu0 %841
    %vm844 = vcmask 261126
    %845 = vst.msk [vmem:[#allocation2] sm:$0xc0] %vm844, %v842
    %v846 = vrot.slane %v839, 6
    %847 = vrot.lane.b32.xlu0 %v846, 32
    %v848 = vpop.permute.xlu0 %847
    %v849 = vsel %vm219, %v848, 0
    %851 = vmatprep.subr.mxu0 0.0
    %852 = vmatpush1.msra.mxu0 %v401
    %853 = vmatprep.subr.mxu0 0.0
    %854 = vmatpush1.msra.mxu0 %v402
    %855 = vmatprep.subr.mxu0 0.0
    %856 = vmatpush1.msra.mxu0 %v403
    %857 = vmatprep.subr.mxu0 0.0
    %858 = vmatpush1.msra.mxu0 %v404
    %859 = vmatprep.subr.mxu0 0.0
    %860 = vmatpush1.msra.mxu0 0.0
    %861 = vmatprep.subr.mxu0 0.0
    %862 = vmatpush1.msra.mxu0 0.0
    %863 = vmatprep.subr.mxu0 0.0
    %864 = vmatpush1.msra.mxu0 0.0
    %865 = vmatprep.subr.mxu0 0.0
    %866 = vmatpush1.msra.mxu0 0.0
    %867 = vmatprep.subr.mxu0 0.0
    %868 = vmatpush1.msra.mxu0 0.0
    %869 = vmatprep.subr.mxu0 0.0
    %870 = vmatpush1.msra.mxu0 0.0
    %871 = vmatprep.subr.mxu0 0.0
    %872 = vmatpush1.msra.mxu0 0.0
    %873 = vmatprep.subr.mxu0 0.0
    %874 = vmatpush1.msra.mxu0 0.0
    %875 = vmatprep.subr.mxu0 0.0
    %876 = vmatpush1.msra.mxu0 0.0
    %877 = vmatprep.subr.mxu0 0.0
    %878 = vmatpush1.msra.mxu0 0.0
    %879 = vmatprep.subr.mxu0 0.0
    %880 = vmatpush1.msra.mxu0 0.0
    %881 = vmatprep.subr.mxu0 0.0
    %882 = vmatpush1.msra.mxu0 0.0
    %883 = vmatprep.subr.mxu0 0.0
    %884 = vmatpush1.msra.mxu0 0.0
    %885 = vmatprep.subr.mxu0 0.0
    %886 = vmatpush1.msra.mxu0 0.0
    %887 = vmatprep.subr.mxu0 0.0
    %888 = vmatpush1.msra.mxu0 0.0
    %889 = vmatprep.subr.mxu0 0.0
    %890 = vmatpush1.msra.mxu0 0.0
    %891 = vmatprep.subr.mxu0 0.0
    %892 = vmatpush1.msra.mxu0 0.0
    %893 = vmatprep.subr.mxu0 0.0
    %894 = vmatpush1.msra.mxu0 0.0
    %895 = vmatprep.subr.mxu0 0.0
    %896 = vmatpush1.msra.mxu0 0.0
    %897 = vmatprep.subr.mxu0 0.0
    %898 = vmatpush1.msra.mxu0 0.0
    %899 = vmatprep.subr.mxu0 0.0
    %900 = vmatpush1.msra.mxu0 0.0
    %901 = vmatprep.subr.mxu0 0.0
    %902 = vmatpush1.msra.mxu0 0.0
    %903 = vmatprep.subr.mxu0 0.0
    %904 = vmatpush1.msra.mxu0 0.0
    %905 = vmatprep.subr.mxu0 0.0
    %906 = vmatpush1.msra.mxu0 0.0
    %907 = vmatprep.subr.mxu0 0.0
    %908 = vmatpush1.msra.mxu0 0.0
    %909 = vmatprep.subr.mxu0 0.0
    %910 = vmatpush1.msra.mxu0 0.0
    %911 = vmatprep.subr.mxu0 0.0
    %912 = vmatpush1.msra.mxu0 0.0
    %913 = vmatprep.subr.mxu0 0.0
    %914 = vmatpush1.msra.mxu0 0.0
    %915 = vmatprep.mubr.f32.mxu0 0.0
    %916 = vmatmul.mubr.f32.gmra.mrb[0].mxu0 %v849
    %v917 = vpop.f32.mrb[0].mxu0
    %v918 = vadd.f32 0.0, %v917
    %v919 = vpop.f32.mrb[0].mxu0
    %920 = vdwg.mxu0
    %v921 = vadd.f32 %v396, %v918
    %v922 = vxor.u32 %v921, 2147483648
    %v923 = vmul.f32 %v922, 1.442695
    %v924 = vpow.pop %v923
    %v925 = vadd.f32 %v924, 1.0
    %v926 = vrcp.pop %v925
    %v927 = vmul.f32 1.0, %v926
    %v928 = vtanh.pop %v921
    %v930 = vrot.slane %v833, 6
    %v932 = vmul.f32 %v927, %v930
    %934 = vrot.lane.b32.xlu0 %v928, 64
    %v935 = vpop.permute.xlu0 %934
    %v937 = vmul.f32 %v927, %v935
    %939 = vrot.lane.b32.xlu0 %v937, 32
    %v940 = vpop.permute.xlu0 %939
    %v942 = vadd.f32 %v932, %v940
    %v943 = vtanh.pop %v942
    %945 = vrot.lane.b32.xlu0 %v943, 64
    %v946 = vpop.permute.xlu0 %945
    %v948 = vmul.f32 %v927, %v946
    %950 = vrot.lane.b32.xlu0 %v948, 32
    %v951 = vpop.permute.xlu0 %950
    %953 = vst.msk [vmem:[#allocation2 + $0x8] sm:$0x3] %vm511, %v951
    %v954 = vsel %vm219, %v951, 0
    %956 = vmatprep.subr.mxu0 0.0
    %957 = vmatpush1.msra.mxu0 %v401
    %958 = vmatprep.subr.mxu0 0.0
    %959 = vmatpush1.msra.mxu0 %v402
    %960 = vmatprep.subr.mxu0 0.0
    %961 = vmatpush1.msra.mxu0 %v403
    %962 = vmatprep.subr.mxu0 0.0
    %963 = vmatpush1.msra.mxu0 %v404
    %964 = vmatprep.subr.mxu0 0.0
    %965 = vmatpush1.msra.mxu0 0.0
    %966 = vmatprep.subr.mxu0 0.0
    %967 = vmatpush1.msra.mxu0 0.0
    %968 = vmatprep.subr.mxu0 0.0
    %969 = vmatpush1.msra.mxu0 0.0
    %970 = vmatprep.subr.mxu0 0.0
    %971 = vmatpush1.msra.mxu0 0.0
    %972 = vmatprep.subr.mxu0 0.0
    %973 = vmatpush1.msra.mxu0 0.0
    %974 = vmatprep.subr.mxu0 0.0
    %975 = vmatpush1.msra.mxu0 0.0
    %976 = vmatprep.subr.mxu0 0.0
    %977 = vmatpush1.msra.mxu0 0.0
    %978 = vmatprep.subr.mxu0 0.0
    %979 = vmatpush1.msra.mxu0 0.0
    %980 = vmatprep.subr.mxu0 0.0
    %981 = vmatpush1.msra.mxu0 0.0
    %982 = vmatprep.subr.mxu0 0.0
    %983 = vmatpush1.msra.mxu0 0.0
    %984 = vmatprep.subr.mxu0 0.0
    %985 = vmatpush1.msra.mxu0 0.0
    %986 = vmatprep.subr.mxu0 0.0
    %987 = vmatpush1.msra.mxu0 0.0
    %988 = vmatprep.subr.mxu0 0.0
    %989 = vmatpush1.msra.mxu0 0.0
    %990 = vmatprep.subr.mxu0 0.0
    %991 = vmatpush1.msra.mxu0 0.0
    %992 = vmatprep.subr.mxu0 0.0
    %993 = vmatpush1.msra.mxu0 0.0
    %994 = vmatprep.subr.mxu0 0.0
    %995 = vmatpush1.msra.mxu0 0.0
    %996 = vmatprep.subr.mxu0 0.0
    %997 = vmatpush1.msra.mxu0 0.0
    %998 = vmatprep.subr.mxu0 0.0
    %999 = vmatpush1.msra.mxu0 0.0
    %1000 = vmatprep.subr.mxu0 0.0
    %1001 = vmatpush1.msra.mxu0 0.0
    %1002 = vmatprep.subr.mxu0 0.0
    %1003 = vmatpush1.msra.mxu0 0.0
    %1004 = vmatprep.subr.mxu0 0.0
    %1005 = vmatpush1.msra.mxu0 0.0
    %1006 = vmatprep.subr.mxu0 0.0
    %1007 = vmatpush1.msra.mxu0 0.0
    %1008 = vmatprep.subr.mxu0 0.0
    %1009 = vmatpush1.msra.mxu0 0.0
    %1010 = vmatprep.subr.mxu0 0.0
    %1011 = vmatpush1.msra.mxu0 0.0
    %1012 = vmatprep.subr.mxu0 0.0
    %1013 = vmatpush1.msra.mxu0 0.0
    %1014 = vmatprep.subr.mxu0 0.0
    %1015 = vmatpush1.msra.mxu0 0.0
    %1016 = vmatprep.subr.mxu0 0.0
    %1017 = vmatpush1.msra.mxu0 0.0
    %1018 = vmatprep.subr.mxu0 0.0
    %1019 = vmatpush1.msra.mxu0 0.0
    %1020 = vmatprep.mubr.f32.mxu0 0.0
    %1021 = vmatmul.mubr.f32.gmra.mrb[0].mxu0 %v954
    %v1022 = vpop.f32.mrb[0].mxu0
    %v1023 = vadd.f32 0.0, %v1022
    %v1024 = vpop.f32.mrb[0].mxu0
    %1025 = vdwg.mxu0
    %v1027 = vrot.slane %v1023, 6
    %v1029 = vadd.f32 %v396, %v1027
    %v1030 = vxor.u32 %v1029, 2147483648
    %v1031 = vmul.f32 %v1030, 1.442695
    %v1032 = vpow.pop %v1031
    %v1033 = vadd.f32 %v1032, 1.0
    %v1034 = vrcp.pop %v1033
    %v1035 = vmul.f32 1.0, %v1034
    %v1036 = vtanh.pop %v1029
    %v1038 = vrot.slane %v942, 6
    %v1040 = vmul.f32 %v1035, %v1038
    %1042 = vrot.lane.b32.xlu0 %v1036, 64
    %v1043 = vpop.permute.xlu0 %1042
    %v1045 = vmul.f32 %v1035, %v1043
    %1047 = vrot.lane.b32.xlu0 %v1045, 32
    %v1048 = vpop.permute.xlu0 %1047
    %v1050 = vadd.f32 %v1040, %v1048
    %v1051 = vtanh.pop %v1050
    %1053 = vrot.lane.b32.xlu0 %v1051, 64
    %v1054 = vpop.permute.xlu0 %1053
    %v1056 = vmul.f32 %v1035, %v1054
    %1058 = vrot.lane.b32.xlu0 %v1056, 32
    %v1059 = vpop.permute.xlu0 %1058
    %1061 = vst.msk [vmem:[#allocation2 + $0x8] sm:$0xc] %vm620, %v1059
    %v1062 = vrot.slane %v1056, 2
    %1063 = vrot.lane.b32.xlu0 %v1062, 32
    %v1064 = vpop.permute.xlu0 %1063
    %v1065 = vsel %vm219, %v1064, 0
    %1067 = vmatprep.subr.mxu0 0.0
    %1068 = vmatpush1.msra.mxu0 %v401
    %1069 = vmatprep.subr.mxu0 0.0
    %1070 = vmatpush1.msra.mxu0 %v402
    %1071 = vmatprep.subr.mxu0 0.0
    %1072 = vmatpush1.msra.mxu0 %v403
    %1073 = vmatprep.subr.mxu0 0.0
    %1074 = vmatpush1.msra.mxu0 %v404
    %1075 = vmatprep.subr.mxu0 0.0
    %1076 = vmatpush1.msra.mxu0 0.0
    %1077 = vmatprep.subr.mxu0 0.0
    %1078 = vmatpush1.msra.mxu0 0.0
    %1079 = vmatprep.subr.mxu0 0.0
    %1080 = vmatpush1.msra.mxu0 0.0
    %1081 = vmatprep.subr.mxu0 0.0
    %1082 = vmatpush1.msra.mxu0 0.0
    %1083 = vmatprep.subr.mxu0 0.0
    %1084 = vmatpush1.msra.mxu0 0.0
    %1085 = vmatprep.subr.mxu0 0.0
    %1086 = vmatpush1.msra.mxu0 0.0
    %1087 = vmatprep.subr.mxu0 0.0
    %1088 = vmatpush1.msra.mxu0 0.0
    %1089 = vmatprep.subr.mxu0 0.0
    %1090 = vmatpush1.msra.mxu0 0.0
    %1091 = vmatprep.subr.mxu0 0.0
    %1092 = vmatpush1.msra.mxu0 0.0
    %1093 = vmatprep.subr.mxu0 0.0
    %1094 = vmatpush1.msra.mxu0 0.0
    %1095 = vmatprep.subr.mxu0 0.0
    %1096 = vmatpush1.msra.mxu0 0.0
    %1097 = vmatprep.subr.mxu0 0.0
    %1098 = vmatpush1.msra.mxu0 0.0
    %1099 = vmatprep.subr.mxu0 0.0
    %1100 = vmatpush1.msra.mxu0 0.0
    %1101 = vmatprep.subr.mxu0 0.0
    %1102 = vmatpush1.msra.mxu0 0.0
    %1103 = vmatprep.subr.mxu0 0.0
    %1104 = vmatpush1.msra.mxu0 0.0
    %1105 = vmatprep.subr.mxu0 0.0
    %1106 = vmatpush1.msra.mxu0 0.0
    %1107 = vmatprep.subr.mxu0 0.0
    %1108 = vmatpush1.msra.mxu0 0.0
    %1109 = vmatprep.subr.mxu0 0.0
    %1110 = vmatpush1.msra.mxu0 0.0
    %1111 = vmatprep.subr.mxu0 0.0
    %1112 = vmatpush1.msra.mxu0 0.0
    %1113 = vmatprep.subr.mxu0 0.0
    %1114 = vmatpush1.msra.mxu0 0.0
    %1115 = vmatprep.subr.mxu0 0.0
    %1116 = vmatpush1.msra.mxu0 0.0
    %1117 = vmatprep.subr.mxu0 0.0
    %1118 = vmatpush1.msra.mxu0 0.0
    %1119 = vmatprep.subr.mxu0 0.0
    %1120 = vmatpush1.msra.mxu0 0.0
    %1121 = vmatprep.subr.mxu0 0.0
    %1122 = vmatpush1.msra.mxu0 0.0
    %1123 = vmatprep.subr.mxu0 0.0
    %1124 = vmatpush1.msra.mxu0 0.0
    %1125 = vmatprep.subr.mxu0 0.0
    %1126 = vmatpush1.msra.mxu0 0.0
    %1127 = vmatprep.subr.mxu0 0.0
    %1128 = vmatpush1.msra.mxu0 0.0
    %1129 = vmatprep.subr.mxu0 0.0
    %1130 = vmatpush1.msra.mxu0 0.0
    %1131 = vmatprep.mubr.f32.mxu0 0.0
    %1132 = vmatmul.mubr.f32.gmra.mrb[0].mxu0 %v1065
    %v1133 = vpop.f32.mrb[0].mxu0
    %v1134 = vadd.f32 0.0, %v1133
    %v1135 = vpop.f32.mrb[0].mxu0
    %1136 = vdwg.mxu0
    %v1138 = vrot.slane %v1134, 4
    %v1140 = vadd.f32 %v396, %v1138
    %v1141 = vxor.u32 %v1140, 2147483648
    %v1142 = vmul.f32 %v1141, 1.442695
    %v1143 = vpow.pop %v1142
    %v1144 = vadd.f32 %v1143, 1.0
    %v1145 = vrcp.pop %v1144
    %v1146 = vmul.f32 1.0, %v1145
    %v1147 = vtanh.pop %v1140
    %v1149 = vrot.slane %v1050, 6
    %v1151 = vmul.f32 %v1146, %v1149
    %1153 = vrot.lane.b32.xlu0 %v1147, 64
    %v1154 = vpop.permute.xlu0 %1153
    %v1156 = vmul.f32 %v1146, %v1154
    %1158 = vrot.lane.b32.xlu0 %v1156, 32
    %v1159 = vpop.permute.xlu0 %1158
    %v1161 = vadd.f32 %v1151, %v1159
    %v1162 = vtanh.pop %v1161
    %1164 = vrot.lane.b32.xlu0 %v1162, 64
    %v1165 = vpop.permute.xlu0 %1164
    %v1167 = vmul.f32 %v1146, %v1165
    %1169 = vrot.lane.b32.xlu0 %v1167, 32
    %v1170 = vpop.permute.xlu0 %1169
    %1172 = vst.msk [vmem:[#allocation2 + $0x8] sm:$0x30] %vm732, %v1170
    %v1173 = vrot.slane %v1167, 4
    %1174 = vrot.lane.b32.xlu0 %v1173, 32
    %v1175 = vpop.permute.xlu0 %1174
    %v1176 = vsel %vm219, %v1175, 0
    %1178 = vmatprep.subr.mxu0 0.0
    %1179 = vmatpush1.msra.mxu0 %v401
    %1180 = vmatprep.subr.mxu0 0.0
    %1181 = vmatpush1.msra.mxu0 %v402
    %1182 = vmatprep.subr.mxu0 0.0
    %1183 = vmatpush1.msra.mxu0 %v403
    %1184 = vmatprep.subr.mxu0 0.0
    %1185 = vmatpush1.msra.mxu0 %v404
    %1186 = vmatprep.subr.mxu0 0.0
    %1187 = vmatpush1.msra.mxu0 0.0
    %1188 = vmatprep.subr.mxu0 0.0
    %1189 = vmatpush1.msra.mxu0 0.0
    %1190 = vmatprep.subr.mxu0 0.0
    %1191 = vmatpush1.msra.mxu0 0.0
    %1192 = vmatprep.subr.mxu0 0.0
    %1193 = vmatpush1.msra.mxu0 0.0
    %1194 = vmatprep.subr.mxu0 0.0
    %1195 = vmatpush1.msra.mxu0 0.0
    %1196 = vmatprep.subr.mxu0 0.0
    %1197 = vmatpush1.msra.mxu0 0.0
    %1198 = vmatprep.subr.mxu0 0.0
    %1199 = vmatpush1.msra.mxu0 0.0
    %1200 = vmatprep.subr.mxu0 0.0
    %1201 = vmatpush1.msra.mxu0 0.0
    %1202 = vmatprep.subr.mxu0 0.0
    %1203 = vmatpush1.msra.mxu0 0.0
    %1204 = vmatprep.subr.mxu0 0.0
    %1205 = vmatpush1.msra.mxu0 0.0
    %1206 = vmatprep.subr.mxu0 0.0
    %1207 = vmatpush1.msra.mxu0 0.0
    %1208 = vmatprep.subr.mxu0 0.0
    %1209 = vmatpush1.msra.mxu0 0.0
    %1210 = vmatprep.subr.mxu0 0.0
    %1211 = vmatpush1.msra.mxu0 0.0
    %1212 = vmatprep.subr.mxu0 0.0
    %1213 = vmatpush1.msra.mxu0 0.0
    %1214 = vmatprep.subr.mxu0 0.0
    %1215 = vmatpush1.msra.mxu0 0.0
    %1216 = vmatprep.subr.mxu0 0.0
    %1217 = vmatpush1.msra.mxu0 0.0
    %1218 = vmatprep.subr.mxu0 0.0
    %1219 = vmatpush1.msra.mxu0 0.0
    %1220 = vmatprep.subr.mxu0 0.0
    %1221 = vmatpush1.msra.mxu0 0.0
    %1222 = vmatprep.subr.mxu0 0.0
    %1223 = vmatpush1.msra.mxu0 0.0
    %1224 = vmatprep.subr.mxu0 0.0
    %1225 = vmatpush1.msra.mxu0 0.0
    %1226 = vmatprep.subr.mxu0 0.0
    %1227 = vmatpush1.msra.mxu0 0.0
    %1228 = vmatprep.subr.mxu0 0.0
    %1229 = vmatpush1.msra.mxu0 0.0
    %1230 = vmatprep.subr.mxu0 0.0
    %1231 = vmatpush1.msra.mxu0 0.0
    %1232 = vmatprep.subr.mxu0 0.0
    %1233 = vmatpush1.msra.mxu0 0.0
    %1234 = vmatprep.subr.mxu0 0.0
    %1235 = vmatpush1.msra.mxu0 0.0
    %1236 = vmatprep.subr.mxu0 0.0
    %1237 = vmatpush1.msra.mxu0 0.0
    %1238 = vmatprep.subr.mxu0 0.0
    %1239 = vmatpush1.msra.mxu0 0.0
    %1240 = vmatprep.subr.mxu0 0.0
    %1241 = vmatpush1.msra.mxu0 0.0
    %1242 = vmatprep.mubr.f32.mxu0 0.0
    %1243 = vmatmul.mubr.f32.gmra.mrb[0].mxu0 %v1176
    %v1244 = vpop.f32.mrb[0].mxu0
    %v1245 = vadd.f32 0.0, %v1244
    %v1246 = vpop.f32.mrb[0].mxu0
    %1247 = vdwg.mxu0
    %v1249 = vrot.slane %v1245, 2
    %v1251 = vadd.f32 %v396, %v1249
    %v1252 = vxor.u32 %v1251, 2147483648
    %v1253 = vmul.f32 %v1252, 1.442695
    %v1254 = vpow.pop %v1253
    %v1255 = vadd.f32 %v1254, 1.0
    %v1256 = vrcp.pop %v1255
    %v1257 = vmul.f32 1.0, %v1256
    %v1258 = vtanh.pop %v1251
    %v1260 = vrot.slane %v1161, 6
    %v1262 = vmul.f32 %v1257, %v1260
    %1264 = vrot.lane.b32.xlu0 %v1258, 64
    %v1265 = vpop.permute.xlu0 %1264
    %v1267 = vmul.f32 %v1257, %v1265
    %1269 = vrot.lane.b32.xlu0 %v1267, 32
    %v1270 = vpop.permute.xlu0 %1269
    %v1272 = vadd.f32 %v1262, %v1270
    %v1273 = vtanh.pop %v1272
    %1275 = vrot.lane.b32.xlu0 %v1273, 64
    %v1276 = vpop.permute.xlu0 %1275
    %v1278 = vmul.f32 %v1257, %v1276
    %1280 = vrot.lane.b32.xlu0 %v1278, 32
    %v1281 = vpop.permute.xlu0 %1280
    %1283 = vst.msk [vmem:[#allocation2 + $0x8] sm:$0xc0] %vm844, %v1281
    %v1284 = vld [vmem:[#allocation2] sm:$0xff]
    %v1285 = vld [vmem:[#allocation2 + $0x8] sm:$0xff]
    %v1286 = vld [vmem:[#allocation11] sm:$0xff]
    %v1287 = vld [vmem:[#allocation11 + $0x8] sm:$0xff]
    %v1288 = vld [vmem:[#allocation11 + $0x10] sm:$0xff]
    %v1289 = vld [vmem:[#allocation11 + $0x18] sm:$0xff]
    %v1290 = vld [vmem:[%s11] sm:$0x1]
    %v1292 = vlaneseq
    %v1293 = vshrl.u32 %v1292, 7
    %v1294 = vsub.s32 0, %v1293
    %v1295 = vrot.slane %v1290, %v1294
    %v1298 = vsel %vm219, %v1284, 0
    %v1301 = vsel %vm219, %v1285, 0
    %1303 = vmatprep.subr.mxu0 0.0
    %1304 = vmatpush1.msra.mxu0 %v1286
    %1305 = vmatprep.subr.mxu0 0.0
    %1306 = vmatpush1.msra.mxu0 %v1287
    %1307 = vmatprep.subr.mxu0 0.0
    %1308 = vmatpush1.msra.mxu0 %v1288
    %1309 = vmatprep.subr.mxu0 0.0
    %1310 = vmatpush1.msra.mxu0 %v1289
    %1311 = vmatprep.subr.mxu0 0.0
    %1312 = vmatpush1.msra.mxu0 0.0
    %1313 = vmatprep.subr.mxu0 0.0
    %1314 = vmatpush1.msra.mxu0 0.0
    %1315 = vmatprep.subr.mxu0 0.0
    %1316 = vmatpush1.msra.mxu0 0.0
    %1317 = vmatprep.subr.mxu0 0.0
    %1318 = vmatpush1.msra.mxu0 0.0
    %1319 = vmatprep.subr.mxu0 0.0
    %1320 = vmatpush1.msra.mxu0 0.0
    %1321 = vmatprep.subr.mxu0 0.0
    %1322 = vmatpush1.msra.mxu0 0.0
    %1323 = vmatprep.subr.mxu0 0.0
    %1324 = vmatpush1.msra.mxu0 0.0
    %1325 = vmatprep.subr.mxu0 0.0
    %1326 = vmatpush1.msra.mxu0 0.0
    %1327 = vmatprep.subr.mxu0 0.0
    %1328 = vmatpush1.msra.mxu0 0.0
    %1329 = vmatprep.subr.mxu0 0.0
    %1330 = vmatpush1.msra.mxu0 0.0
    %1331 = vmatprep.subr.mxu0 0.0
    %1332 = vmatpush1.msra.mxu0 0.0
    %1333 = vmatprep.subr.mxu0 0.0
    %1334 = vmatpush1.msra.mxu0 0.0
    %1335 = vmatprep.subr.mxu0 0.0
    %1336 = vmatpush1.msra.mxu0 0.0
    %1337 = vmatprep.subr.mxu0 0.0
    %1338 = vmatpush1.msra.mxu0 0.0
    %1339 = vmatprep.subr.mxu0 0.0
    %1340 = vmatpush1.msra.mxu0 0.0
    %1341 = vmatprep.subr.mxu0 0.0
    %1342 = vmatpush1.msra.mxu0 0.0
    %1343 = vmatprep.subr.mxu0 0.0
    %1344 = vmatpush1.msra.mxu0 0.0
    %1345 = vmatprep.subr.mxu0 0.0
    %1346 = vmatpush1.msra.mxu0 0.0
    %1347 = vmatprep.subr.mxu0 0.0
    %1348 = vmatpush1.msra.mxu0 0.0
    %1349 = vmatprep.subr.mxu0 0.0
    %1350 = vmatpush1.msra.mxu0 0.0
    %1351 = vmatprep.subr.mxu0 0.0
    %1352 = vmatpush1.msra.mxu0 0.0
    %1353 = vmatprep.subr.mxu0 0.0
    %1354 = vmatpush1.msra.mxu0 0.0
    %1355 = vmatprep.subr.mxu0 0.0
    %1356 = vmatpush1.msra.mxu0 0.0
    %1357 = vmatprep.subr.mxu0 0.0
    %1358 = vmatpush1.msra.mxu0 0.0
    %1359 = vmatprep.subr.mxu0 0.0
    %1360 = vmatpush1.msra.mxu0 0.0
    %1361 = vmatprep.subr.mxu0 0.0
    %1362 = vmatpush1.msra.mxu0 0.0
    %1363 = vmatprep.subr.mxu0 0.0
    %1364 = vmatpush1.msra.mxu0 0.0
    %1365 = vmatprep.subr.mxu0 0.0
    %1366 = vmatpush1.msra.mxu0 0.0
    %1367 = vmatprep.mubr.f32.mxu0 0.0
    %1368 = vmatmul.mubr.f32.gmra.mrb[0].mxu0 %v1298
    %v1369 = vpop.f32.mrb[0].mxu0
    %v1370 = vadd.f32 %v1295, %v1369
    %v1371 = vpop.f32.mrb[0].mxu0
    %1372 = vmatprep.mubr.f32.mxu0 0.0
    %1373 = vmatmul.mubr.f32.gmra.mrb[0].mxu0 %v1301
    %v1374 = vpop.f32.mrb[0].mxu0
    %v1375 = vadd.f32 %v1295, %v1374
    %v1376 = vpop.f32.mrb[0].mxu0
    %1377 = vdwg.mxu0
    %1378 = vst [vmem:[#allocation12] sm:$0xff] %v1370
    %1379 = vst [vmem:[#allocation12 + $0x8] sm:$0xff] %v1375
    %1380 = vst.msk [vmem:[#allocation13 - $0x6] sm:$0xc0] %vm844, %v1281
    %1382 = vrot.lane.b32.xlu0 %v1272, 96
    %v1383 = vpop.permute.xlu0 %1382
    %1385 = vst.msk [vmem:[#allocation15 - $0x6] sm:$0xc0] %vm844, %v1383
    // Predicated region
    $region70: #{tpu_custom_call.1} parent=1 // pred_check
      _
    $region71: #{tpu_custom_call.1} parent=1 // pred_check_branch
      %1387 = sbr.rel (0) target = $region73
    $region72: #{tpu_custom_call.1} parent=1 // pred_region
      %s1389 = ssub.s32 256, 256
      %1390 = vsyncadd [#allocation5], %s1389
      %s1391 = sshll.u32 [#allocation12], 4
      %s1392 = int_to_ptr.vmem [resolvable:$true] %s1391
      %1397 = dma.vmem_to_hbm [thread:$0]  %s1392, 256, %s12, [#allocation5], 128, 128, 8
    $region73: #{tpu_custom_call.1} parent=1 // pred_fallthru
      _
    // Predicated region
    $region74: #{tpu_custom_call.1} parent=1 // pred_check
      _
    $region75: #{tpu_custom_call.1} parent=1 // pred_check_branch
      %1399 = sbr.rel (0) target = $region77
    $region76: #{tpu_custom_call.1} parent=1 // pred_region
      %s1401 = ssub.s32 32, 32
      %1402 = vsyncadd [#allocation14], %s1401
      %s1404 = sshll.u32 [#allocation13], 4
      %s1405 = int_to_ptr.vmem [resolvable:$true] %s1404
      %1407 = dma.vmem_to_hbm [thread:$0]  %s1405, 32, %s13, [#allocation14]
    $region77: #{tpu_custom_call.1} parent=1 // pred_fallthru
      _
    // Predicated region
    $region78: #{tpu_custom_call.1} parent=1 // pred_check
      _
    $region79: #{tpu_custom_call.1} parent=1 // pred_check_branch
      %1409 = sbr.rel (0) target = $region81
    $region80: #{tpu_custom_call.1} parent=1 // pred_region
      %s1411 = ssub.s32 32, 32
      %1412 = vsyncadd [#allocation14], %s1411
      %s1414 = sshll.u32 [#allocation15], 4
      %s1415 = int_to_ptr.vmem [resolvable:$true] %s1414
      %1417 = dma.vmem_to_hbm [thread:$0]  %s1415, 32, %s14, [#allocation14]
    $region81: #{tpu_custom_call.1} parent=1 // pred_fallthru
      _
    // Predicated region
    $region82: #{tpu_custom_call.1} parent=1 // pred_check
      _
    $region83: #{tpu_custom_call.1} parent=1 // pred_check_branch
      %1419 = sbr.rel (0) target = $region85
    $region84: #{tpu_custom_call.1} parent=1 // pred_region
      %1420 = dma.done [#allocation5], 256
    $region85: #{tpu_custom_call.1} parent=1 // pred_fallthru
      _
    // Predicated region
    $region86: #{tpu_custom_call.1} parent=1 // pred_check
      _
    $region87: #{tpu_custom_call.1} parent=1 // pred_check_branch
      %1422 = sbr.rel (0) target = $region89
    $region88: #{tpu_custom_call.1} parent=1 // pred_region
      %1423 = dma.done [#allocation14], 32
    $region89: #{tpu_custom_call.1} parent=1 // pred_fallthru
      _
    // Predicated region
    $region90: #{tpu_custom_call.1} parent=1 // pred_check
      _
    $region91: #{tpu_custom_call.1} parent=1 // pred_check_branch
      %1425 = sbr.rel (0) target = $region93
    $region92: #{tpu_custom_call.1} parent=1 // pred_region
      %1426 = dma.done [#allocation14], 32
    $region93: #{tpu_custom_call.1} parent=1 // pred_fallthru
      _
    %1427 = vsyncpa [#allocation4], 1
    %1428 = vsyncpa [#allocation7], 1
    %1429 = vsyncpa [#allocation10], 1
    %1430 = vsyncpa [#allocation5], 1
    %1431 = vsyncpa [#allocation14], 1

</llo_original>
